<compile_context>
chip_gen: v7x
topology: tpu7x:2x2x1
jax: 0.10.0
libtpu: 0.0.40
codegen_flags: <defaults>
</compile_context>

<pallas_src>
import functools

import jax
import jax.numpy as jnp
from jax.experimental import pallas as pl
from jax.experimental.pallas import tpu as pltpu


def news_encoder_kernel(x_ref, wconv_ref, bconv_ref, watt_ref, batt_ref, q_ref,
                        out_ref, *, block_b, seq_len, window_size):
    # x_ref     : (block_b, L+ws-1, E)  bf16  halo'd embedded titles
    # wconv_ref : (ws, E, Fp)           bf16  conv weight, one (E, Fp) slab per tap
    # bconv_ref : (1, Fp)               f32   conv bias (zero-padded)
    # watt_ref  : (Fp, Qp)              bf16  additive-attention linear weight
    # batt_ref  : (1, Qp)               f32   additive-attention linear bias
    # q_ref     : (1, Qp)               f32   attention query vector
    # out_ref   : (block_b, Fp)         f32   pooled news vectors (lane-dense slab)
    L = seq_len
    e_dim = x_ref.shape[-1]
    fp = out_ref.shape[-1]
    qp = q_ref.shape[-1]

    # --- 1-D conv over L as ws shifted MXU matmuls, accumulated in f32. ---
    conv = jnp.zeros((block_b * L, fp), jnp.float32)
    for w in range(window_size):                      # ws is small & static
        x_w = x_ref[:, w:w + L, :].reshape(block_b * L, e_dim)       # bf16
        conv = conv + jnp.dot(x_w, wconv_ref[w],
                              preferred_element_type=jnp.float32)
    act = jnp.maximum(conv + bconv_ref[...], 0.0)                    # (BL, Fp) f32

    # --- Additive-attention projection: tanh(act @ W + b) in f32. ---
    proj = jnp.tanh(jnp.dot(act.astype(watt_ref.dtype), watt_ref[...],
                            preferred_element_type=jnp.float32)
                    + batt_ref[...])                                 # (BL, Qp)

    act3 = act.reshape(block_b, L, fp)                               # (B, L, Fp)
    proj3 = proj.reshape(block_b, L, qp)                             # (B, L, Qp)
    qv = q_ref[...].reshape(1, 1, qp)

    # Scores: VPU multiply + lane reduce (no M=1 MXU matvecs).       # (B, L, 1)
    s = jnp.sum(proj3 * qv, axis=-1, keepdims=True)

    # Numerically-stable softmax over L (sublane reduces), exact division.
    m = jnp.max(s, axis=1, keepdims=True)                            # (B, 1, 1)
    e = jnp.exp(s - m)
    z = jnp.sum(e, axis=1, keepdims=True)                            # (B, 1, 1)
    wts = e / z                                                      # (B, L, 1)

    # Weighted pooling over L: broadcast-multiply + sublane reduce.
    out_ref[...] = jnp.sum(wts * act3, axis=1)                       # (B, Fp)


def news_encoder_forward(title_ids, params, *, window_size, block_b=None,
                         vmem_limit_bytes=None):
    """title_ids: int32 [B, L].  Returns float32 [B, num_filters]."""
    emb_table = params["word_embedding"]        # (V, E)
    wconv = params["conv_weight"]               # (F, 1, ws, E)  (PyTorch layout)
    bconv = params["conv_bias"]                 # (F,)
    watt = params["att_linear_weight"]          # (Q, F)         (PyTorch layout)
    batt = params["att_linear_bias"]            # (Q,)
    qvec = params["att_query"]                  # (Q,)

    B, L = title_ids.shape
    V, E = emb_table.shape
    F = wconv.shape[0]
    Q = watt.shape[0]
    ws = window_size
    assert ws >= 1 and ws % 2 == 1, "Conv 'same' padding assumes odd window_size"
    pad = (ws - 1) // 2
    Lh = L + ws - 1

    # Lane-dense (multiple-of-128) filter / query widths; exact zero padding.
    Fp = ((F + 127) // 128) * 128
    Qp = ((Q + 127) // 128) * 128

    # block_b: multiple of 8, ~2 MiB bf16 input tile, >= 2 grid steps when B
    # allows (pipelining + v7x dual-TensorCore sharding of the "parallel" axis).
    if block_b is None:
        per_item = Lh * E * 2                           # bf16 bytes / batch item
        block_b = max(8, ((2 * 1024 * 1024) // max(per_item, 1)) // 8 * 8)
        if B >= 16:
            block_b = min(block_b, max(8, (B // 2) // 8 * 8))
        else:
            block_b = 8
    block_b = max(8, (block_b // 8) * 8)
    n_blocks = max(1, pl.cdiv(B, block_b))
    Bp = n_blocks * block_b

    # --- glue (XLA): embedding gather + halo / batch padding; no im2col. ---
    # TODO(synk): at production vocab sizes fold the gather into the kernel via
    # scalar-prefetched row indices + manual DMA instead of materializing x.
    x = jnp.take(emb_table, title_ids, axis=0)                     # (B, L, E)
    x = jnp.pad(x, ((0, Bp - B), (pad, pad), (0, 0)))              # (Bp, Lh, E)
    x_bf = x.astype(jnp.bfloat16)

    # Conv weight per tap: wtap[w, e, f] = wconv[f, 0, w, e], zero-padded to Fp.
    wconv_taps = jnp.transpose(wconv[:, 0, :, :], (1, 2, 0))       # (ws, E, F)
    wconv_taps = jnp.pad(wconv_taps,
                         ((0, 0), (0, 0), (0, Fp - F))).astype(jnp.bfloat16)
    bconv_row = jnp.pad(bconv.reshape(1, F),
                        ((0, 0), (0, Fp - F))).astype(jnp.float32)
    watt_mat = jnp.pad(jnp.transpose(watt),
                       ((0, Fp - F), (0, Qp - Q))).astype(jnp.bfloat16)  # (Fp, Qp)
    batt_row = jnp.pad(batt.reshape(1, Q),
                       ((0, 0), (0, Qp - Q))).astype(jnp.float32)
    q_row = jnp.pad(qvec.reshape(1, Q),
                    ((0, 0), (0, Qp - Q))).astype(jnp.float32)

    # VMEM budget: 2x (input + output tile) + resident weights + f32 working
    # set, with headroom; floor lifts v5e's 16 MiB default, cap fits v7x 64 MiB.
    if vmem_limit_bytes is None:
        x_tile = block_b * Lh * E * 2
        out_tile = block_b * Fp * 4
        w_bytes = (ws * E * Fp + Fp * Qp) * 2 + (Fp + 2 * Qp) * 4
        work = block_b * L * (2 * Fp + Qp) * 4
        vmem_limit_bytes = int(min(48 * 1024 * 1024,
                                   max(32 * 1024 * 1024,
                                       2 * (x_tile + out_tile) + w_bytes + 2 * work)))

    kernel = functools.partial(news_encoder_kernel, block_b=block_b, seq_len=L,
                               window_size=ws)

    grid_spec = pltpu.PrefetchScalarGridSpec(
        num_scalar_prefetch=0,
        grid=(Bp // block_b,),
        in_specs=[
            # Streamed activations: one halo'd batch chunk per grid step.
            pl.BlockSpec((block_b, Lh, E), lambda i: (i, 0, 0)),
            # Weights: constant block index -> resident in VMEM across steps.
            pl.BlockSpec((ws, E, Fp), lambda i: (0, 0, 0)),
            pl.BlockSpec((1, Fp), lambda i: (0, 0)),
            pl.BlockSpec((Fp, Qp), lambda i: (0, 0)),
            pl.BlockSpec((1, Qp), lambda i: (0, 0)),
            pl.BlockSpec((1, Qp), lambda i: (0, 0)),
        ],
        out_specs=pl.BlockSpec((block_b, Fp), lambda i: (i, 0)),
    )

    out = pl.pallas_call(
        kernel,
        out_shape=jax.ShapeDtypeStruct((Bp, Fp), jnp.float32),
        grid_spec=grid_spec,
        compiler_params=pltpu.CompilerParams(
            dimension_semantics=("parallel",),
            vmem_limit_bytes=vmem_limit_bytes),
    )(x_bf, wconv_taps, bconv_row, watt_mat, batt_row, q_row)

    return out[:B, :F]


def reference_forward(title_ids, params, *, window_size):
    """Pure-JAX f32 reference matching the PyTorch forward (eval mode)."""
    emb_table = params["word_embedding"]
    wconv = params["conv_weight"]
    bconv = params["conv_bias"]
    watt = params["att_linear_weight"]
    batt = params["att_linear_bias"]
    qvec = params["att_query"]

    B, L = title_ids.shape
    F = wconv.shape[0]
    ws = window_size
    pad = (ws - 1) // 2

    x = jnp.take(emb_table, title_ids, axis=0)                     # (B, L, E)
    x_pad = jnp.pad(x, ((0, 0), (pad, pad), (0, 0)))
    conv = jnp.zeros((B, L, F), jnp.float32)
    for w in range(ws):
        conv = conv + jnp.einsum("ble,fe->blf", x_pad[:, w:w + L, :],
                                 wconv[:, 0, w, :])
    conv = conv + bconv[None, None, :]
    act = jnp.maximum(conv, 0.0)                                   # (B, L, F)
    proj = jnp.tanh(jnp.einsum("blf,qf->blq", act, watt) + batt[None, None, :])
    scores = jnp.einsum("blq,q->bl", proj, qvec)
    wts = jax.nn.softmax(scores, axis=1)
    return jnp.einsum("bl,blf->bf", wts, act)


if __name__ == "__main__":
    # Small config consistent with the module; B=16 exercises a 2-step grid.
    B = 16             # batch_size
    L = 16             # num_words_title
    V = 100            # num_words
    E = 32             # word_embedding_dim
    F = 32             # num_filters
    Q = 16             # query_vector_dim
    ws = 3             # window_size (odd, >= 1)

    key = jax.random.PRNGKey(0)
    k_emb, k_wc, k_bc, k_wa, k_ba, k_q, k_ids = jax.random.split(key, 7)

    emb = jax.random.normal(k_emb, (V, E), jnp.float32) * 0.1
    emb = emb.at[0].set(0.0)                      # padding_idx = 0
    params = {
        "word_embedding": emb,
        "conv_weight": jax.random.normal(k_wc, (F, 1, ws, E), jnp.float32) * 0.1,
        "conv_bias": jax.random.normal(k_bc, (F,), jnp.float32) * 0.1,
        "att_linear_weight": jax.random.normal(k_wa, (Q, F), jnp.float32) * 0.1,
        "att_linear_bias": jax.random.normal(k_ba, (Q,), jnp.float32) * 0.1,
        "att_query": jax.random.uniform(k_q, (Q,), jnp.float32, -0.1, 0.1),
    }

    title_ids = jax.random.randint(k_ids, (B, L), 0, V, dtype=jnp.int32)

    out = news_encoder_forward(title_ids, params, window_size=ws)
    out = jax.block_until_ready(out)

    ref = reference_forward(title_ids, params, window_size=ws)
    assert out.shape == (B, F)
    # Tolerance accounts for bf16 matmul inputs (accumulation and all nonlinear
    # math stay in f32); the softmax division itself is exact.
    assert jnp.allclose(out, ref, atol=5e-3, rtol=2e-2), "mismatch vs reference"

    print("KERNEL_OK")
</pallas_src>

<mosaic_0001>
module attributes {stable_mosaic.version = 11 : i64} {
  func.func @news_encoder_kernel(%arg0: i32, %arg1: memref<8x18x32xbf16, #tpu.memory_space<vmem>>, %arg2: memref<3x32x128xbf16, #tpu.memory_space<vmem>>, %arg3: memref<1x128xf32, #tpu.memory_space<vmem>>, %arg4: memref<128x128xbf16, #tpu.memory_space<vmem>>, %arg5: memref<1x128xf32, #tpu.memory_space<vmem>>, %arg6: memref<1x128xf32, #tpu.memory_space<vmem>>, %arg7: memref<8x128xf32, #tpu.memory_space<vmem>>) attributes {dimension_semantics = [#tpu.dimension_semantics<parallel>], iteration_bounds = array<i64: 2>, scalar_prefetch = 0 : i64, scratch_operands = 0 : i64, tpu.core_type = #tpu.core_type<tc>, window_params = [{transform_indices = @transform_0, window_bounds = array<i64: 8, 18, 32>}, {pipeline_mode = #tpu.pipeline_mode<synchronous>, transform_indices = @transform_1, window_bounds = array<i64: 3, 32, 128>}, {pipeline_mode = #tpu.pipeline_mode<synchronous>, transform_indices = @transform_2, window_bounds = array<i64: 1, 128>}, {pipeline_mode = #tpu.pipeline_mode<synchronous>, transform_indices = @transform_3, window_bounds = array<i64: 128, 128>}, {pipeline_mode = #tpu.pipeline_mode<synchronous>, transform_indices = @transform_4, window_bounds = array<i64: 1, 128>}, {pipeline_mode = #tpu.pipeline_mode<synchronous>, transform_indices = @transform_5, window_bounds = array<i64: 1, 128>}, {transform_indices = @transform_6, window_bounds = array<i64: 8, 128>}]} {
    %cst = arith.constant 0.000000e+00 : f32
    %0 = vector.broadcast %cst : f32 to vector<128x128xf32>
    %c0 = arith.constant 0 : index
    %c0_0 = arith.constant 0 : index
    %c0_1 = arith.constant 0 : index
    %1 = vector.load %arg1[%c0, %c0_0, %c0_1] : memref<8x18x32xbf16, #tpu.memory_space<vmem>>, vector<8x16x32xbf16>
    %2 = vector.shape_cast %1 : vector<8x16x32xbf16> to vector<128x32xbf16>
    %c0_2 = arith.constant 0 : index
    %c0_3 = arith.constant 0 : index
    %c0_4 = arith.constant 0 : index
    %3 = vector.load %arg2[%c0_2, %c0_3, %c0_4] : memref<3x32x128xbf16, #tpu.memory_space<vmem>>, vector<1x32x128xbf16>
    %4 = vector.shape_cast %3 : vector<1x32x128xbf16> to vector<32x128xbf16>
    %cst_5 = arith.constant dense<0.000000e+00> : vector<128x128xf32>
    %5 = tpu.matmul %2, %4, %cst_5 {dimension_numbers = #tpu.dot_dimension_numbers<[1], [0], [0], [1], [0, 0, 1, 1], [], []>} : vector<128x32xbf16>, vector<32x128xbf16>, vector<128x128xf32> -> vector<128x128xf32>
    %6 = arith.addf %0, %5 : vector<128x128xf32>
    %c0_6 = arith.constant 0 : index
    %c1 = arith.constant 1 : index
    %c0_7 = arith.constant 0 : index
    %7 = vector.load %arg1[%c0_6, %c1, %c0_7] : memref<8x18x32xbf16, #tpu.memory_space<vmem>>, vector<8x16x32xbf16>
    %8 = vector.shape_cast %7 : vector<8x16x32xbf16> to vector<128x32xbf16>
    %c1_8 = arith.constant 1 : index
    %c0_9 = arith.constant 0 : index
    %c0_10 = arith.constant 0 : index
    %9 = vector.load %arg2[%c1_8, %c0_9, %c0_10] : memref<3x32x128xbf16, #tpu.memory_space<vmem>>, vector<1x32x128xbf16>
    %10 = vector.shape_cast %9 : vector<1x32x128xbf16> to vector<32x128xbf16>
    %cst_11 = arith.constant dense<0.000000e+00> : vector<128x128xf32>
    %11 = tpu.matmul %8, %10, %cst_11 {dimension_numbers = #tpu.dot_dimension_numbers<[1], [0], [0], [1], [0, 0, 1, 1], [], []>} : vector<128x32xbf16>, vector<32x128xbf16>, vector<128x128xf32> -> vector<128x128xf32>
    %12 = arith.addf %6, %11 : vector<128x128xf32>
    %c0_12 = arith.constant 0 : index
    %c2 = arith.constant 2 : index
    %c0_13 = arith.constant 0 : index
    %13 = vector.load %arg1[%c0_12, %c2, %c0_13] : memref<8x18x32xbf16, #tpu.memory_space<vmem>>, vector<8x16x32xbf16>
    %14 = vector.shape_cast %13 : vector<8x16x32xbf16> to vector<128x32xbf16>
    %c2_14 = arith.constant 2 : index
    %c0_15 = arith.constant 0 : index
    %c0_16 = arith.constant 0 : index
    %15 = vector.load %arg2[%c2_14, %c0_15, %c0_16] : memref<3x32x128xbf16, #tpu.memory_space<vmem>>, vector<1x32x128xbf16>
    %16 = vector.shape_cast %15 : vector<1x32x128xbf16> to vector<32x128xbf16>
    %cst_17 = arith.constant dense<0.000000e+00> : vector<128x128xf32>
    %17 = tpu.matmul %14, %16, %cst_17 {dimension_numbers = #tpu.dot_dimension_numbers<[1], [0], [0], [1], [0, 0, 1, 1], [], []>} : vector<128x32xbf16>, vector<32x128xbf16>, vector<128x128xf32> -> vector<128x128xf32>
    %18 = arith.addf %12, %17 : vector<128x128xf32>
    %c0_18 = arith.constant 0 : index
    %c0_19 = arith.constant 0 : index
    %19 = vector.load %arg3[%c0_18, %c0_19] : memref<1x128xf32, #tpu.memory_space<vmem>>, vector<1x128xf32>
    %20 = vector.broadcast %19 : vector<1x128xf32> to vector<128x128xf32>
    %21 = arith.addf %18, %20 : vector<128x128xf32>
    %cst_20 = arith.constant 0.000000e+00 : f32
    %22 = vector.broadcast %cst_20 : f32 to vector<128x128xf32>
    %23 = arith.maximumf %21, %22 : vector<128x128xf32>
    %24 = arith.truncf %23 : vector<128x128xf32> to vector<128x128xbf16>
    %c0_21 = arith.constant 0 : index
    %c0_22 = arith.constant 0 : index
    %25 = vector.load %arg4[%c0_21, %c0_22] : memref<128x128xbf16, #tpu.memory_space<vmem>>, vector<128x128xbf16>
    %cst_23 = arith.constant dense<0.000000e+00> : vector<128x128xf32>
    %26 = tpu.matmul %24, %25, %cst_23 {dimension_numbers = #tpu.dot_dimension_numbers<[1], [0], [0], [1], [0, 0, 1, 1], [], []>} : vector<128x128xbf16>, vector<128x128xbf16>, vector<128x128xf32> -> vector<128x128xf32>
    %c0_24 = arith.constant 0 : index
    %c0_25 = arith.constant 0 : index
    %27 = vector.load %arg5[%c0_24, %c0_25] : memref<1x128xf32, #tpu.memory_space<vmem>>, vector<1x128xf32>
    %28 = vector.broadcast %27 : vector<1x128xf32> to vector<128x128xf32>
    %29 = arith.addf %26, %28 : vector<128x128xf32>
    %30 = math.tanh %29 : vector<128x128xf32>
    %31 = vector.shape_cast %23 : vector<128x128xf32> to vector<8x16x128xf32>
    %32 = vector.shape_cast %30 : vector<128x128xf32> to vector<8x16x128xf32>
    %c0_26 = arith.constant 0 : index
    %c0_27 = arith.constant 0 : index
    %33 = vector.load %arg6[%c0_26, %c0_27] : memref<1x128xf32, #tpu.memory_space<vmem>>, vector<1x128xf32>
    %34 = vector.shape_cast %33 : vector<1x128xf32> to vector<1x1x128xf32>
    %35 = vector.broadcast %34 : vector<1x1x128xf32> to vector<8x16x128xf32>
    %36 = arith.mulf %32, %35 : vector<8x16x128xf32>
    %cst_28 = arith.constant dense<0.000000e+00> : vector<8x16xf32>
    %37 = vector.multi_reduction <add>, %36, %cst_28 [2] : vector<8x16x128xf32> to vector<8x16xf32>
    %38 = vector.shape_cast %37 : vector<8x16xf32> to vector<8x16x1xf32>
    %cst_29 = arith.constant dense<0xFF800000> : vector<8x1xf32>
    %39 = vector.multi_reduction <maximumf>, %38, %cst_29 [1] : vector<8x16x1xf32> to vector<8x1xf32>
    %40 = vector.shape_cast %39 : vector<8x1xf32> to vector<8x1x1xf32>
    %41 = vector.broadcast %40 : vector<8x1x1xf32> to vector<8x16x1xf32>
    %42 = arith.subf %38, %41 : vector<8x16x1xf32>
    %43 = math.exp %42 : vector<8x16x1xf32>
    %cst_30 = arith.constant dense<0.000000e+00> : vector<8x1xf32>
    %44 = vector.multi_reduction <add>, %43, %cst_30 [1] : vector<8x16x1xf32> to vector<8x1xf32>
    %45 = vector.shape_cast %44 : vector<8x1xf32> to vector<8x1x1xf32>
    %46 = vector.broadcast %45 : vector<8x1x1xf32> to vector<8x16x1xf32>
    %47 = arith.divf %43, %46 : vector<8x16x1xf32>
    %48 = vector.broadcast %47 : vector<8x16x1xf32> to vector<8x16x128xf32>
    %49 = arith.mulf %48, %31 : vector<8x16x128xf32>
    %cst_31 = arith.constant dense<0.000000e+00> : vector<8x128xf32>
    %50 = vector.multi_reduction <add>, %49, %cst_31 [1] : vector<8x16x128xf32> to vector<8x128xf32>
    %c0_32 = arith.constant 0 : index
    %c0_33 = arith.constant 0 : index
    %51 = vector.load %arg7[%c0_32, %c0_33] : memref<8x128xf32, #tpu.memory_space<vmem>>, vector<8x128xf32>
    tpu.vector_store %arg7[%c0_32, %c0_33], %50 {strides = array<i32>} : memref<8x128xf32, #tpu.memory_space<vmem>>, vector<8x128xf32>,
    return
  }
  func.func @transform_0(%arg0: i32) -> (i32, i32, i32) {
    %c0_i32 = arith.constant 0 : i32
    %c0_i32_0 = arith.constant 0 : i32
    %c0_i32_1 = arith.constant 0 : i32
    return %arg0, %c0_i32, %c0_i32_0 : i32, i32, i32
  }
  func.func @transform_1(%arg0: i32) -> (i32, i32, i32) {
    %c0_i32 = arith.constant 0 : i32
    %c0_i32_0 = arith.constant 0 : i32
    %c0_i32_1 = arith.constant 0 : i32
    %c0_i32_2 = arith.constant 0 : i32
    return %c0_i32, %c0_i32_0, %c0_i32_1 : i32, i32, i32
  }
  func.func @transform_2(%arg0: i32) -> (i32, i32) {
    %c0_i32 = arith.constant 0 : i32
    %c0_i32_0 = arith.constant 0 : i32
    %c0_i32_1 = arith.constant 0 : i32
    return %c0_i32, %c0_i32_0 : i32, i32
  }
  func.func @transform_3(%arg0: i32) -> (i32, i32) {
    %c0_i32 = arith.constant 0 : i32
    %c0_i32_0 = arith.constant 0 : i32
    %c0_i32_1 = arith.constant 0 : i32
    return %c0_i32, %c0_i32_0 : i32, i32
  }
  func.func @transform_4(%arg0: i32) -> (i32, i32) {
    %c0_i32 = arith.constant 0 : i32
    %c0_i32_0 = arith.constant 0 : i32
    %c0_i32_1 = arith.constant 0 : i32
    return %c0_i32, %c0_i32_0 : i32, i32
  }
  func.func @transform_5(%arg0: i32) -> (i32, i32) {
    %c0_i32 = arith.constant 0 : i32
    %c0_i32_0 = arith.constant 0 : i32
    %c0_i32_1 = arith.constant 0 : i32
    return %c0_i32, %c0_i32_0 : i32, i32
  }
  func.func @transform_6(%arg0: i32) -> (i32, i32) {
    %c0_i32 = arith.constant 0 : i32
    %c0_i32_0 = arith.constant 0 : i32
    return %arg0, %c0_i32 : i32, i32
  }
}

</mosaic_0001>

<llo_original>
// kernel: tpu_custom_call.1
$region0: #{tpu_custom_call.1}
  #allocation0 [shape = 'u32[]', space=smem, size = 0x4, offset = 0x4, fixed_abs, tag = 'smem constant byte address 0x4 - core index']
  #allocation1 [shape = 'u32[144,128]{1,0:T(1,128)}', space=vmem, size = 0x12000, scoped, tag = 'internal scratch']
  %s0 = inlined_call_operand.vmem [shape: bf16[16,18,32], index: 0, kind: input, shape index: {}]
  %s1 = inlined_call_operand.vmem [shape: bf16[3,32,128], index: 1, kind: input, shape index: {}]
  %s2 = inlined_call_operand.vmem [shape: f32[1,128], index: 2, kind: input, shape index: {}]
  %s3 = inlined_call_operand.vmem [shape: bf16[128,128], index: 3, kind: input, shape index: {}]
  %s4 = inlined_call_operand.vmem [shape: f32[1,128], index: 4, kind: input, shape index: {}]
  %s5 = inlined_call_operand.vmem [shape: f32[1,128], index: 5, kind: input, shape index: {}]
  %s6 = inlined_call_operand.hbm [shape: f32[16,128], index: 6, kind: output, shape index: {}]
  %s7 = sld [smem:[#allocation0]]
  $region57: #{tpu_custom_call.1} parent=0
    _
  %s9 = ssub.s32 1, %s7
  %s10 = scalar_select 0, %s9, %s7
  $region1: #{tpu_custom_call.1} parent=0
    #allocation2 [shape = 'u8[8192]{0}', space=vmem, size = 0x2000, scoped, tag = 'output window, operand 0']
    #allocation3 [shape = 's32[2]{0}', space=sflag, size = 0x8, scoped, tag = 'scoped memory for tpu_custom_call.1']
    %11 = vsyncpa [#allocation3], 0
    %s12 = scalar_lea.sflag [#allocation3], 1
    %13 = vsyncpa %s12, 0
    loop: start=0, step=1, limit=4
    $region2: #{tpu_custom_call.1} parent=1 // loop_pre_header
      _
    $region3: #{tpu_custom_call.1} parent=1 // loop_header
      %s15 = sphi 0, %s19
      %p16 = scmp.ge.s32.totalorder %s15, 4
      %s25 = sphi 0, %s27
      %s28 = sphi 0, %s25
      %s29 = sphi 0, %s28
      %s45 = sphi 0, %s29
      %s49 = sphi 0, %s49
      %s51 = sphi 0, %s49
      %s52 = sphi 0, %s51
      %s66 = sphi 0, %s52
      %s70 = sphi 0, %s70
      %s72 = sphi 0, %s70
      %s73 = sphi 0, %s72
      %s87 = sphi 0, %s73
      %s91 = sphi 0, %s91
      %s93 = sphi 0, %s91
      %s94 = sphi 0, %s93
      %s108 = sphi 0, %s94
      %s112 = sphi 0, %s112
      %s114 = sphi 0, %s112
      %s115 = sphi 0, %s114
      %s129 = sphi 0, %s115
      %s133 = sphi 0, %s133
      %s135 = sphi 0, %s133
      %s136 = sphi 0, %s135
      %s150 = sphi 0, %s136
      %s156 = sphi 0, %s158
      %s159 = sphi 0, %s156
      %s160 = sphi 0, %s159
      %s176 = sphi 0, %s160
    $region4: #{tpu_custom_call.1} parent=1 // loop_header_branch
      %18 = sbr.rel (%p16) target = $region8
    $region5: #{tpu_custom_call.1} parent=1 // loop_body
      %s20 = ssub.s32 %s15, 1
      %s21 = ssub.s32 %s15, 2
      %s22 = sadd.s32 %s15, 1
      %s23 = ssub.s32 %s15, %s22
      %p24 = scmp.eq.s32.totalorder %s23, 0
      %s26 = sadd.s32 %s25, 1
      %s27 = scalar_select %p24, %s25, %s26
      %p30 = pneg %p24
      %p31 = scmp.eq.s32.totalorder %s15, 1
      %p32 = por %p30, %p31
      %p33 = scmp.ne.s32.totalorder %s25, %s28
      %p34 = scmp.eq.s32.totalorder %s15, 0
      %p35 = por %p33, %p34
      %p36 = scmp.ne.s32.totalorder %s25, %s28
      %p37 = scmp.eq.s32.totalorder %s20, 1
      %p38 = por %p36, %p37
      %p39 = scmp.ne.s32.totalorder %s28, %s29
      %p40 = scmp.eq.s32.totalorder %s20, 0
      %p41 = por %p39, %p40
      %p42 = scmp.ne.s32.totalorder %s28, %s29
      %p43 = scmp.eq.s32.totalorder %s21, 1
      %p44 = por %p42, %p43
      %p46 = scmp.ne.s32.totalorder %s29, %s45
      %p47 = scmp.eq.s32.totalorder %s21, 0
      %p48 = por %p46, %p47
      %s50 = sadd.s32 %s49, 1
      %p53 = scmp.eq.s32.totalorder %s15, 1
      %p54 = scmp.ne.s32.totalorder %s49, %s51
      %p55 = scmp.eq.s32.totalorder %s15, 0
      %p56 = por %p54, %p55
      %p57 = scmp.ne.s32.totalorder %s49, %s51
      %p58 = scmp.eq.s32.totalorder %s20, 1
      %p59 = por %p57, %p58
      %p60 = scmp.ne.s32.totalorder %s51, %s52
      %p61 = scmp.eq.s32.totalorder %s20, 0
      %p62 = por %p60, %p61
      %p63 = scmp.ne.s32.totalorder %s51, %s52
      %p64 = scmp.eq.s32.totalorder %s21, 1
      %p65 = por %p63, %p64
      %p67 = scmp.ne.s32.totalorder %s52, %s66
      %p68 = scmp.eq.s32.totalorder %s21, 0
      %p69 = por %p67, %p68
      %s71 = sadd.s32 %s70, 1
      %p74 = scmp.eq.s32.totalorder %s15, 1
      %p75 = scmp.ne.s32.totalorder %s70, %s72
      %p76 = scmp.eq.s32.totalorder %s15, 0
      %p77 = por %p75, %p76
      %p78 = scmp.ne.s32.totalorder %s70, %s72
      %p79 = scmp.eq.s32.totalorder %s20, 1
      %p80 = por %p78, %p79
      %p81 = scmp.ne.s32.totalorder %s72, %s73
      %p82 = scmp.eq.s32.totalorder %s20, 0
      %p83 = por %p81, %p82
      %p84 = scmp.ne.s32.totalorder %s72, %s73
      %p85 = scmp.eq.s32.totalorder %s21, 1
      %p86 = por %p84, %p85
      %p88 = scmp.ne.s32.totalorder %s73, %s87
      %p89 = scmp.eq.s32.totalorder %s21, 0
      %p90 = por %p88, %p89
      %s92 = sadd.s32 %s91, 1
      %p95 = scmp.eq.s32.totalorder %s15, 1
      %p96 = scmp.ne.s32.totalorder %s91, %s93
      %p97 = scmp.eq.s32.totalorder %s15, 0
      %p98 = por %p96, %p97
      %p99 = scmp.ne.s32.totalorder %s91, %s93
      %p100 = scmp.eq.s32.totalorder %s20, 1
      %p101 = por %p99, %p100
      %p102 = scmp.ne.s32.totalorder %s93, %s94
      %p103 = scmp.eq.s32.totalorder %s20, 0
      %p104 = por %p102, %p103
      %p105 = scmp.ne.s32.totalorder %s93, %s94
      %p106 = scmp.eq.s32.totalorder %s21, 1
      %p107 = por %p105, %p106
      %p109 = scmp.ne.s32.totalorder %s94, %s108
      %p110 = scmp.eq.s32.totalorder %s21, 0
      %p111 = por %p109, %p110
      %s113 = sadd.s32 %s112, 1
      %p116 = scmp.eq.s32.totalorder %s15, 1
      %p117 = scmp.ne.s32.totalorder %s112, %s114
      %p118 = scmp.eq.s32.totalorder %s15, 0
      %p119 = por %p117, %p118
      %p120 = scmp.ne.s32.totalorder %s112, %s114
      %p121 = scmp.eq.s32.totalorder %s20, 1
      %p122 = por %p120, %p121
      %p123 = scmp.ne.s32.totalorder %s114, %s115
      %p124 = scmp.eq.s32.totalorder %s20, 0
      %p125 = por %p123, %p124
      %p126 = scmp.ne.s32.totalorder %s114, %s115
      %p127 = scmp.eq.s32.totalorder %s21, 1
      %p128 = por %p126, %p127
      %p130 = scmp.ne.s32.totalorder %s115, %s129
      %p131 = scmp.eq.s32.totalorder %s21, 0
      %p132 = por %p130, %p131
      %s134 = sadd.s32 %s133, 1
      %p137 = scmp.eq.s32.totalorder %s15, 1
      %p138 = scmp.ne.s32.totalorder %s133, %s135
      %p139 = scmp.eq.s32.totalorder %s15, 0
      %p140 = por %p138, %p139
      %p141 = scmp.ne.s32.totalorder %s133, %s135
      %p142 = scmp.eq.s32.totalorder %s20, 1
      %p143 = por %p141, %p142
      %p144 = scmp.ne.s32.totalorder %s135, %s136
      %p145 = scmp.eq.s32.totalorder %s20, 0
      %p146 = por %p144, %p145
      %p147 = scmp.ne.s32.totalorder %s135, %s136
      %p148 = scmp.eq.s32.totalorder %s21, 1
      %p149 = por %p147, %p148
      %p151 = scmp.ne.s32.totalorder %s136, %s150
      %p152 = scmp.eq.s32.totalorder %s21, 0
      %p153 = por %p151, %p152
      %s154 = ssub.s32 %s15, %s22
      %p155 = scmp.eq.s32.totalorder %s154, 0
      %s157 = sadd.s32 %s156, 1
      %s158 = scalar_select %p155, %s156, %s157
      %p161 = pneg %p155
      %p162 = scmp.eq.s32.totalorder %s15, 1
      %p163 = por %p161, %p162
      %p164 = scmp.ne.s32.totalorder %s156, %s159
      %p165 = scmp.eq.s32.totalorder %s15, 0
      %p166 = por %p164, %p165
      %p167 = scmp.ne.s32.totalorder %s156, %s159
      %p168 = scmp.eq.s32.totalorder %s20, 1
      %p169 = por %p167, %p168
      %p170 = scmp.ne.s32.totalorder %s159, %s160
      %p171 = scmp.eq.s32.totalorder %s20, 0
      %p172 = por %p170, %p171
      %p173 = scmp.ne.s32.totalorder %s159, %s160
      %p174 = scmp.eq.s32.totalorder %s21, 1
      %p175 = por %p173, %p174
      %p177 = scmp.ne.s32.totalorder %s160, %s176
      %p178 = scmp.eq.s32.totalorder %s21, 0
      %p179 = por %p177, %p178
      %p180 = scmp.le.s32.totalorder 1, %s15
      %p181 = scmp.lt.s32.totalorder %s15, 3
      %p182 = pnand %p180, %p181
      %p183 = pneg %p182
      // Predicated region
      $region9: #{tpu_custom_call.1} parent=5 // pred_check
        _
      $region10: #{tpu_custom_call.1} parent=5 // pred_check_branch
        %185 = sbr.rel (%p182) target = $region12
      $region11: #{tpu_custom_call.1} parent=5 // pred_region
        %s186 = ssub.s32 %s15, 1
        // Predicated region
        $region13: #{tpu_custom_call.1} parent=11 // pred_check
          %p187 = pneg %p62
        $region14: #{tpu_custom_call.1} parent=11 // pred_check_branch
          %189 = sbr.rel (%p187) target = $region16
        $region15: #{tpu_custom_call.1} parent=11 // pred_region
          _
        $region16: #{tpu_custom_call.1} parent=11 // pred_fallthru
          _
        // Predicated region
        $region17: #{tpu_custom_call.1} parent=11 // pred_check
          %p190 = pneg %p83
        $region18: #{tpu_custom_call.1} parent=11 // pred_check_branch
          %192 = sbr.rel (%p190) target = $region20
        $region19: #{tpu_custom_call.1} parent=11 // pred_region
          _
        $region20: #{tpu_custom_call.1} parent=11 // pred_fallthru
          _
        // Predicated region
        $region21: #{tpu_custom_call.1} parent=11 // pred_check
          %p193 = pneg %p104
        $region22: #{tpu_custom_call.1} parent=11 // pred_check_branch
          %195 = sbr.rel (%p193) target = $region24
        $region23: #{tpu_custom_call.1} parent=11 // pred_region
          _
        $region24: #{tpu_custom_call.1} parent=11 // pred_fallthru
          _
        // Predicated region
        $region25: #{tpu_custom_call.1} parent=11 // pred_check
          %p196 = pneg %p125
        $region26: #{tpu_custom_call.1} parent=11 // pred_check_branch
          %198 = sbr.rel (%p196) target = $region28
        $region27: #{tpu_custom_call.1} parent=11 // pred_region
          _
        $region28: #{tpu_custom_call.1} parent=11 // pred_fallthru
          _
        // Predicated region
        $region29: #{tpu_custom_call.1} parent=11 // pred_check
          %p199 = pneg %p146
        $region30: #{tpu_custom_call.1} parent=11 // pred_check_branch
          %201 = sbr.rel (%p199) target = $region32
        $region31: #{tpu_custom_call.1} parent=11 // pred_region
          _
        $region32: #{tpu_custom_call.1} parent=11 // pred_fallthru
          _
      $region12: #{tpu_custom_call.1} parent=5 // pred_fallthru
        _
      %p202 = scmp.lt.s32.totalorder %s15, 2
      // Predicated region
      $region33: #{tpu_custom_call.1} parent=5 // pred_check
        %p203 = pneg %p202
      $region34: #{tpu_custom_call.1} parent=5 // pred_check_branch
        %205 = sbr.rel (%p203) target = $region36
      $region35: #{tpu_custom_call.1} parent=5 // pred_region
        // Predicated region
        $region37: #{tpu_custom_call.1} parent=35 // pred_check
          %p206 = pneg %p35
        $region38: #{tpu_custom_call.1} parent=35 // pred_check_branch
          %208 = sbr.rel (%p206) target = $region40
        $region39: #{tpu_custom_call.1} parent=35 // pred_region
          %s209 = smul.u32 8, %s15
          %p210 = scmp.lt.s32.totalorder %s209, 15
          %s211 = scalar_select %p210, %s209, 15
          %s212 = smul.addr %s211, 3
          %s213 = smul.addr %s212, 4
          %s214 = scalar_lea.vmem %s0, %s213
          %s215 = smul.u32 8, %s15
        $region40: #{tpu_custom_call.1} parent=35 // pred_fallthru
          _
      $region36: #{tpu_custom_call.1} parent=5 // pred_fallthru
        _
      %p216 = scmp.le.s32.totalorder 1, %s15
      %p217 = scmp.lt.s32.totalorder %s15, 3
      %p218 = pnand %p216, %p217
      %p219 = pneg %p218
      // Predicated region
      $region41: #{tpu_custom_call.1} parent=5 // pred_check
        _
      $region42: #{tpu_custom_call.1} parent=5 // pred_check_branch
        %221 = sbr.rel (%p218) target = $region44
      $region43: #{tpu_custom_call.1} parent=5 // pred_region
        %s222 = ssub.s32 %s15, 1
        %s223 = smul.u32 8, %s20
        %p224 = scmp.lt.s32.totalorder %s223, 15
        %s225 = scalar_select %p224, %s223, 15
        %s226 = smul.addr %s225, 3
        %s227 = smul.addr %s226, 4
        %s228 = scalar_lea.vmem %s0, %s227
        %p229 = pneg %p41
        %p230 = pneg %p38
        %p231 = pneg %p62
        %p232 = pneg %p59
        %p233 = pneg %p83
        %p234 = pneg %p80
        %p235 = pneg %p104
        %p236 = pneg %p101
        %p237 = pneg %p125
        %p238 = pneg %p122
        %p239 = pneg %p146
        %p240 = pneg %p143
        %p241 = pneg %p172
        %p242 = pneg %p169
        %s243 = sand.u32 %s159, 1
        %s244 = scalar_lea.sflag [#allocation3], %s243
        %s245 = sand.u32 %s159, 1
        %s246 = smul.addr %s245, 8
        %s247 = scalar_lea.vmem [#allocation2], %s246
        %s248 = smul.u32 8, %s20
        %p249 = scmp.lt.s32.totalorder %s248, 15
        %s250 = scalar_select %p249, %s248, 15
        %s251 = smul.addr %s250, 3
        %s252 = smul.addr %s251, 4
        %s253 = scalar_lea.vmem %s0, %s252
        %s254 = smul.u32 8, %s20
        %v256 = vld [vmem:[%s253] sm:$0xf]
        %v257 = vld [vmem:[%s253 + $0x4] sm:$0xf]
        %v258 = vld [vmem:[%s253 + $0xc] sm:$0xf]
        %v259 = vld [vmem:[%s253 + $0x10] sm:$0xf]
        %v260 = vld [vmem:[%s253 + $0x18] sm:$0xf]
        %v261 = vld [vmem:[%s253 + $0x1c] sm:$0xf]
        %v262 = vld [vmem:[%s253 + $0x24] sm:$0xf]
        %v263 = vld [vmem:[%s253 + $0x28] sm:$0xf]
        %v264 = vld [vmem:[%s253 + $0x30] sm:$0xf]
        %v265 = vld [vmem:[%s253 + $0x34] sm:$0xf]
        %v266 = vld [vmem:[%s253 + $0x3c] sm:$0xf]
        %v267 = vld [vmem:[%s253 + $0x40] sm:$0xf]
        %v268 = vld [vmem:[%s253 + $0x48] sm:$0xf]
        %v269 = vld [vmem:[%s253 + $0x4c] sm:$0xf]
        %v270 = vld [vmem:[%s253 + $0x54] sm:$0xf]
        %v271 = vld [vmem:[%s253 + $0x58] sm:$0xf]
        %v272 = vld [vmem:[%s1] sm:$0xf]
        %v273 = vld [vmem:[%s1 + $0x4] sm:$0xf]
        %v274 = vld [vmem:[%s1 + $0x8] sm:$0xf]
        %v275 = vld [vmem:[%s1 + $0xc] sm:$0xf]
        %v276 = vld [vmem:[%s253 + $0x8] sm:$0x1]
        %v277 = vld [vmem:[%s253 + $0x14] sm:$0x1]
        %v278 = vld [vmem:[%s253 + $0x20] sm:$0x1]
        %v279 = vld [vmem:[%s253 + $0x2c] sm:$0x1]
        %v280 = vld [vmem:[%s253 + $0x38] sm:$0x1]
        %v281 = vld [vmem:[%s253 + $0x44] sm:$0x1]
        %v282 = vld [vmem:[%s253 + $0x50] sm:$0x1]
        %v283 = vld [vmem:[%s253 + $0x5c] sm:$0x1]
        %vm284 = vsmask.f32 3328
        %vm285 = vsmask.f32 7440
        %vm286 = vmor %vm284, %vm285
        %v288 = vshrl.u32 %v256, 16
        %v290 = vrot.slane %v288, 4
        %v291 = vshll.u32 %v256, 16
        %v293 = vrot.slane %v291, 5
        %v294 = vor.u32 %v290, %v293
        %v295 = vrot.slane %v294, 4
        %v297 = vshll.u32 %v257, 16
        %v299 = vrot.slane %v297, 5
        %v300 = vsel %vm286, %v295, %v299
        %v301 = vshrl.u32 %v257, 16
        %v303 = vrot.slane %v301, 4
        %v304 = vor.u32 %v303, %v299
        %v305 = vrot.slane %v304, 4
        %v307 = vshll.u32 %v276, 16
        %v309 = vrot.slane %v307, 5
        %v310 = vsel %vm286, %v305, %v309
        %v312 = vshrl.u32 %v258, 16
        %v314 = vrot.slane %v312, 4
        %v315 = vshll.u32 %v258, 16
        %v317 = vrot.slane %v315, 5
        %v318 = vor.u32 %v314, %v317
        %v319 = vrot.slane %v318, 4
        %v321 = vshll.u32 %v259, 16
        %v323 = vrot.slane %v321, 5
        %v324 = vsel %vm286, %v319, %v323
        %v325 = vshrl.u32 %v259, 16
        %v327 = vrot.slane %v325, 4
        %v328 = vor.u32 %v327, %v323
        %v329 = vrot.slane %v328, 4
        %v331 = vshll.u32 %v277, 16
        %v333 = vrot.slane %v331, 5
        %v334 = vsel %vm286, %v329, %v333
        %v336 = vshrl.u32 %v260, 16
        %v338 = vrot.slane %v336, 4
        %v339 = vshll.u32 %v260, 16
        %v341 = vrot.slane %v339, 5
        %v342 = vor.u32 %v338, %v341
        %v343 = vrot.slane %v342, 4
        %v345 = vshll.u32 %v261, 16
        %v347 = vrot.slane %v345, 5
        %v348 = vsel %vm286, %v343, %v347
        %v349 = vshrl.u32 %v261, 16
        %v351 = vrot.slane %v349, 4
        %v352 = vor.u32 %v351, %v347
        %v353 = vrot.slane %v352, 4
        %v355 = vshll.u32 %v278, 16
        %v357 = vrot.slane %v355, 5
        %v358 = vsel %vm286, %v353, %v357
        %v360 = vshrl.u32 %v262, 16
        %v362 = vrot.slane %v360, 4
        %v363 = vshll.u32 %v262, 16
        %v365 = vrot.slane %v363, 5
        %v366 = vor.u32 %v362, %v365
        %v367 = vrot.slane %v366, 4
        %v369 = vshll.u32 %v263, 16
        %v371 = vrot.slane %v369, 5
        %v372 = vsel %vm286, %v367, %v371
        %v373 = vshrl.u32 %v263, 16
        %v375 = vrot.slane %v373, 4
        %v376 = vor.u32 %v375, %v371
        %v377 = vrot.slane %v376, 4
        %v379 = vshll.u32 %v279, 16
        %v381 = vrot.slane %v379, 5
        %v382 = vsel %vm286, %v377, %v381
        %v384 = vshrl.u32 %v264, 16
        %v386 = vrot.slane %v384, 4
        %v387 = vshll.u32 %v264, 16
        %v389 = vrot.slane %v387, 5
        %v390 = vor.u32 %v386, %v389
        %v391 = vrot.slane %v390, 4
        %v393 = vshll.u32 %v265, 16
        %v395 = vrot.slane %v393, 5
        %v396 = vsel %vm286, %v391, %v395
        %v397 = vshrl.u32 %v265, 16
        %v399 = vrot.slane %v397, 4
        %v400 = vor.u32 %v399, %v395
        %v401 = vrot.slane %v400, 4
        %v403 = vshll.u32 %v280, 16
        %v405 = vrot.slane %v403, 5
        %v406 = vsel %vm286, %v401, %v405
        %v408 = vshrl.u32 %v266, 16
        %v410 = vrot.slane %v408, 4
        %v411 = vshll.u32 %v266, 16
        %v413 = vrot.slane %v411, 5
        %v414 = vor.u32 %v410, %v413
        %v415 = vrot.slane %v414, 4
        %v417 = vshll.u32 %v267, 16
        %v419 = vrot.slane %v417, 5
        %v420 = vsel %vm286, %v415, %v419
        %v421 = vshrl.u32 %v267, 16
        %v423 = vrot.slane %v421, 4
        %v424 = vor.u32 %v423, %v419
        %v425 = vrot.slane %v424, 4
        %v427 = vshll.u32 %v281, 16
        %v429 = vrot.slane %v427, 5
        %v430 = vsel %vm286, %v425, %v429
        %v432 = vshrl.u32 %v268, 16
        %v434 = vrot.slane %v432, 4
        %v435 = vshll.u32 %v268, 16
        %v437 = vrot.slane %v435, 5
        %v438 = vor.u32 %v434, %v437
        %v439 = vrot.slane %v438, 4
        %v441 = vshll.u32 %v269, 16
        %v443 = vrot.slane %v441, 5
        %v444 = vsel %vm286, %v439, %v443
        %v445 = vshrl.u32 %v269, 16
        %v447 = vrot.slane %v445, 4
        %v448 = vor.u32 %v447, %v443
        %v449 = vrot.slane %v448, 4
        %v451 = vshll.u32 %v282, 16
        %v453 = vrot.slane %v451, 5
        %v454 = vsel %vm286, %v449, %v453
        %v456 = vshrl.u32 %v270, 16
        %v458 = vrot.slane %v456, 4
        %v459 = vshll.u32 %v270, 16
        %v461 = vrot.slane %v459, 5
        %v462 = vor.u32 %v458, %v461
        %v463 = vrot.slane %v462, 4
        %v465 = vshll.u32 %v271, 16
        %v467 = vrot.slane %v465, 5
        %v468 = vsel %vm286, %v463, %v467
        %v469 = vshrl.u32 %v271, 16
        %v471 = vrot.slane %v469, 4
        %v472 = vor.u32 %v471, %v467
        %v473 = vrot.slane %v472, 4
        %v475 = vshll.u32 %v283, 16
        %v477 = vrot.slane %v475, 5
        %v478 = vsel %vm286, %v473, %v477
        %s479 = scalar_lea.vmem %s1, 16
        %v480 = vld [vmem:[%s479] sm:$0xf]
        %v481 = vld [vmem:[%s479 + $0x4] sm:$0xf]
        %v482 = vld [vmem:[%s479 + $0x8] sm:$0xf]
        %v483 = vld [vmem:[%s479 + $0xc] sm:$0xf]
        %v484 = vunpack.c.l.b16 %v300
        %v485 = vunpack.c.l.b16 %v310
        %v486 = vunpack.c.l.b16 %v324
        %v487 = vunpack.c.l.b16 %v334
        %v488 = vunpack.c.l.b16 %v348
        %v489 = vunpack.c.l.b16 %v358
        %v490 = vunpack.c.l.b16 %v372
        %v491 = vunpack.c.l.b16 %v382
        %v492 = vunpack.c.l.b16 %v396
        %v493 = vunpack.c.l.b16 %v406
        %v494 = vunpack.c.l.b16 %v420
        %v495 = vunpack.c.l.b16 %v430
        %v496 = vunpack.c.l.b16 %v444
        %v497 = vunpack.c.l.b16 %v454
        %v498 = vunpack.c.l.b16 %v468
        %v499 = vunpack.c.l.b16 %v478
        %v500 = vpack.c.b16 %v485, %v484
        %v501 = vpack.c.b16 %v487, %v486
        %v502 = vpack.c.b16 %v489, %v488
        %v503 = vpack.c.b16 %v491, %v490
        %v504 = vpack.c.b16 %v493, %v492
        %v505 = vpack.c.b16 %v495, %v494
        %v506 = vpack.c.b16 %v497, %v496
        %v507 = vpack.c.b16 %v499, %v498
        %v512 = vunpack.c.l.b16 %v480
        %v513 = vunpack.c.l.b16 %v481
        %v514 = vunpack.c.l.b16 %v482
        %v515 = vunpack.c.l.b16 %v483
        %v516 = vpack.c.b16 %v513, %v512
        %v517 = vpack.c.b16 %v515, %v514
        %vm520 = vcmask 261120
        %v522 = vsel %vm520, %v500, 0
        %v525 = vsel %vm520, %v501, 0
        %v528 = vsel %vm520, %v502, 0
        %v531 = vsel %vm520, %v503, 0
        %v534 = vsel %vm520, %v504, 0
        %v537 = vsel %vm520, %v505, 0
        %v540 = vsel %vm520, %v506, 0
        %v543 = vsel %vm520, %v507, 0
        %545 = vmatprep.subr.bf16.mxu0 0
        %546 = vmatpush1.bf16.msra.mxu0 %v516
        %547 = vmatprep.subr.bf16.mxu0 0
        %548 = vmatpush1.bf16.msra.mxu0 %v517
        %549 = vmatprep.subr.bf16.mxu0 0
        %550 = vmatpush1.bf16.msra.mxu0 0
        %551 = vmatprep.subr.bf16.mxu0 0
        %552 = vmatpush1.bf16.msra.mxu0 0
        %553 = vmatprep.subr.bf16.mxu0 0
        %554 = vmatpush1.bf16.msra.mxu0 0
        %555 = vmatprep.subr.bf16.mxu0 0
        %556 = vmatpush1.bf16.msra.mxu0 0
        %557 = vmatprep.subr.bf16.mxu0 0
        %558 = vmatpush1.bf16.msra.mxu0 0
        %559 = vmatprep.subr.bf16.mxu0 0
        %560 = vmatpush1.bf16.msra.mxu0 0
        %561 = vmatprep.subr.bf16.mxu0 0
        %562 = vmatpush1.bf16.msra.mxu0 0
        %563 = vmatprep.subr.bf16.mxu0 0
        %564 = vmatpush1.bf16.msra.mxu0 0
        %565 = vmatprep.subr.bf16.mxu0 0
        %566 = vmatpush1.bf16.msra.mxu0 0
        %567 = vmatprep.subr.bf16.mxu0 0
        %568 = vmatpush1.bf16.msra.mxu0 0
        %569 = vmatprep.subr.bf16.mxu0 0
        %570 = vmatpush1.bf16.msra.mxu0 0
        %571 = vmatprep.subr.bf16.mxu0 0
        %572 = vmatpush1.bf16.msra.mxu0 0
        %573 = vmatprep.subr.bf16.mxu0 0
        %574 = vmatpush1.bf16.msra.mxu0 0
        %575 = vmatprep.subr.bf16.mxu0 0
        %576 = vmatpush1.bf16.msra.mxu0 0
        %577 = vmatprep.mubr.bf16.mxu0 0
        %578 = vmatmul.mubr.bf16.gmra.mrb[0].mxu0 %v522
        %v579 = vpop.f32.mrb[0].mxu0
        %v580 = vadd.f32 0.0, %v579
        %v581 = vpop.f32.mrb[0].mxu0
        %v582 = vpop.f32.mrb[0].mxu0
        %v583 = vadd.f32 0.0, %v582
        %v584 = vpop.f32.mrb[0].mxu0
        %585 = vmatprep.mubr.bf16.mxu0 0
        %586 = vmatmul.mubr.bf16.gmra.mrb[0].mxu0 %v525
        %v587 = vpop.f32.mrb[0].mxu0
        %v588 = vadd.f32 0.0, %v587
        %v589 = vpop.f32.mrb[0].mxu0
        %v590 = vpop.f32.mrb[0].mxu0
        %v591 = vadd.f32 0.0, %v590
        %v592 = vpop.f32.mrb[0].mxu0
        %593 = vmatprep.mubr.bf16.mxu0 0
        %594 = vmatmul.mubr.bf16.gmra.mrb[0].mxu0 %v528
        %v595 = vpop.f32.mrb[0].mxu0
        %v596 = vadd.f32 0.0, %v595
        %v597 = vpop.f32.mrb[0].mxu0
        %v598 = vpop.f32.mrb[0].mxu0
        %v599 = vadd.f32 0.0, %v598
        %v600 = vpop.f32.mrb[0].mxu0
        %601 = vmatprep.mubr.bf16.mxu0 0
        %602 = vmatmul.mubr.bf16.gmra.mrb[0].mxu0 %v531
        %v603 = vpop.f32.mrb[0].mxu0
        %v604 = vadd.f32 0.0, %v603
        %v605 = vpop.f32.mrb[0].mxu0
        %v606 = vpop.f32.mrb[0].mxu0
        %v607 = vadd.f32 0.0, %v606
        %v608 = vpop.f32.mrb[0].mxu0
        %609 = vmatprep.mubr.bf16.mxu0 0
        %610 = vmatmul.mubr.bf16.gmra.mrb[0].mxu0 %v534
        %v611 = vpop.f32.mrb[0].mxu0
        %v612 = vadd.f32 0.0, %v611
        %v613 = vpop.f32.mrb[0].mxu0
        %v614 = vpop.f32.mrb[0].mxu0
        %v615 = vadd.f32 0.0, %v614
        %v616 = vpop.f32.mrb[0].mxu0
        %617 = vmatprep.mubr.bf16.mxu0 0
        %618 = vmatmul.mubr.bf16.gmra.mrb[0].mxu0 %v537
        %v619 = vpop.f32.mrb[0].mxu0
        %v620 = vadd.f32 0.0, %v619
        %v621 = vpop.f32.mrb[0].mxu0
        %v622 = vpop.f32.mrb[0].mxu0
        %v623 = vadd.f32 0.0, %v622
        %v624 = vpop.f32.mrb[0].mxu0
        %625 = vmatprep.mubr.bf16.mxu0 0
        %626 = vmatmul.mubr.bf16.gmra.mrb[0].mxu0 %v540
        %v627 = vpop.f32.mrb[0].mxu0
        %v628 = vadd.f32 0.0, %v627
        %v629 = vpop.f32.mrb[0].mxu0
        %v630 = vpop.f32.mrb[0].mxu0
        %v631 = vadd.f32 0.0, %v630
        %v632 = vpop.f32.mrb[0].mxu0
        %633 = vmatprep.mubr.bf16.mxu0 0
        %634 = vmatmul.mubr.bf16.gmra.mrb[0].mxu0 %v543
        %v635 = vpop.f32.mrb[0].mxu0
        %v636 = vadd.f32 0.0, %v635
        %v637 = vpop.f32.mrb[0].mxu0
        %v638 = vpop.f32.mrb[0].mxu0
        %v639 = vadd.f32 0.0, %v638
        %v640 = vpop.f32.mrb[0].mxu0
        %641 = vdwg.mxu0
        %v658 = vunpack.c.l.b16 %v256
        %v659 = vunpack.c.l.b16 %v257
        %v660 = vunpack.c.l.b16 %v258
        %v661 = vunpack.c.l.b16 %v259
        %v662 = vunpack.c.l.b16 %v260
        %v663 = vunpack.c.l.b16 %v261
        %v664 = vunpack.c.l.b16 %v262
        %v665 = vunpack.c.l.b16 %v263
        %v666 = vunpack.c.l.b16 %v264
        %v667 = vunpack.c.l.b16 %v265
        %v668 = vunpack.c.l.b16 %v266
        %v669 = vunpack.c.l.b16 %v267
        %v670 = vunpack.c.l.b16 %v268
        %v671 = vunpack.c.l.b16 %v269
        %v672 = vunpack.c.l.b16 %v270
        %v673 = vunpack.c.l.b16 %v271
        %v674 = vpack.c.b16 %v659, %v658
        %v675 = vpack.c.b16 %v661, %v660
        %v676 = vpack.c.b16 %v663, %v662
        %v677 = vpack.c.b16 %v665, %v664
        %v678 = vpack.c.b16 %v667, %v666
        %v679 = vpack.c.b16 %v669, %v668
        %v680 = vpack.c.b16 %v671, %v670
        %v681 = vpack.c.b16 %v673, %v672
        %v686 = vunpack.c.l.b16 %v272
        %v687 = vunpack.c.l.b16 %v273
        %v688 = vunpack.c.l.b16 %v274
        %v689 = vunpack.c.l.b16 %v275
        %v690 = vpack.c.b16 %v687, %v686
        %v691 = vpack.c.b16 %v689, %v688
        %v695 = vsel %vm520, %v674, 0
        %v698 = vsel %vm520, %v675, 0
        %v701 = vsel %vm520, %v676, 0
        %v704 = vsel %vm520, %v677, 0
        %v707 = vsel %vm520, %v678, 0
        %v710 = vsel %vm520, %v679, 0
        %v713 = vsel %vm520, %v680, 0
        %v716 = vsel %vm520, %v681, 0
        %718 = vmatprep.subr.bf16.mxu0 0
        %719 = vmatpush1.bf16.msra.mxu0 %v690
        %720 = vmatprep.subr.bf16.mxu0 0
        %721 = vmatpush1.bf16.msra.mxu0 %v691
        %722 = vmatprep.subr.bf16.mxu0 0
        %723 = vmatpush1.bf16.msra.mxu0 0
        %724 = vmatprep.subr.bf16.mxu0 0
        %725 = vmatpush1.bf16.msra.mxu0 0
        %726 = vmatprep.subr.bf16.mxu0 0
        %727 = vmatpush1.bf16.msra.mxu0 0
        %728 = vmatprep.subr.bf16.mxu0 0
        %729 = vmatpush1.bf16.msra.mxu0 0
        %730 = vmatprep.subr.bf16.mxu0 0
        %731 = vmatpush1.bf16.msra.mxu0 0
        %732 = vmatprep.subr.bf16.mxu0 0
        %733 = vmatpush1.bf16.msra.mxu0 0
        %734 = vmatprep.subr.bf16.mxu0 0
        %735 = vmatpush1.bf16.msra.mxu0 0
        %736 = vmatprep.subr.bf16.mxu0 0
        %737 = vmatpush1.bf16.msra.mxu0 0
        %738 = vmatprep.subr.bf16.mxu0 0
        %739 = vmatpush1.bf16.msra.mxu0 0
        %740 = vmatprep.subr.bf16.mxu0 0
        %741 = vmatpush1.bf16.msra.mxu0 0
        %742 = vmatprep.subr.bf16.mxu0 0
        %743 = vmatpush1.bf16.msra.mxu0 0
        %744 = vmatprep.subr.bf16.mxu0 0
        %745 = vmatpush1.bf16.msra.mxu0 0
        %746 = vmatprep.subr.bf16.mxu0 0
        %747 = vmatpush1.bf16.msra.mxu0 0
        %748 = vmatprep.subr.bf16.mxu0 0
        %749 = vmatpush1.bf16.msra.mxu0 0
        %750 = vmatprep.mubr.bf16.mxu0 0
        %751 = vmatmul.mubr.bf16.gmra.mrb[0].mxu0 %v695
        %v752 = vpop.f32.mrb[0].mxu0
        %v753 = vadd.f32 %v580, %v752
        %v754 = vpop.f32.mrb[0].mxu0
        %v755 = vpop.f32.mrb[0].mxu0
        %v756 = vadd.f32 %v583, %v755
        %v757 = vpop.f32.mrb[0].mxu0
        %758 = vmatprep.mubr.bf16.mxu0 0
        %759 = vmatmul.mubr.bf16.gmra.mrb[0].mxu0 %v698
        %v760 = vpop.f32.mrb[0].mxu0
        %v761 = vadd.f32 %v588, %v760
        %v762 = vpop.f32.mrb[0].mxu0
        %v763 = vpop.f32.mrb[0].mxu0
        %v764 = vadd.f32 %v591, %v763
        %v765 = vpop.f32.mrb[0].mxu0
        %766 = vmatprep.mubr.bf16.mxu0 0
        %767 = vmatmul.mubr.bf16.gmra.mrb[0].mxu0 %v701
        %v768 = vpop.f32.mrb[0].mxu0
        %v769 = vadd.f32 %v596, %v768
        %v770 = vpop.f32.mrb[0].mxu0
        %v771 = vpop.f32.mrb[0].mxu0
        %v772 = vadd.f32 %v599, %v771
        %v773 = vpop.f32.mrb[0].mxu0
        %774 = vmatprep.mubr.bf16.mxu0 0
        %775 = vmatmul.mubr.bf16.gmra.mrb[0].mxu0 %v704
        %v776 = vpop.f32.mrb[0].mxu0
        %v777 = vadd.f32 %v604, %v776
        %v778 = vpop.f32.mrb[0].mxu0
        %v779 = vpop.f32.mrb[0].mxu0
        %v780 = vadd.f32 %v607, %v779
        %v781 = vpop.f32.mrb[0].mxu0
        %782 = vmatprep.mubr.bf16.mxu0 0
        %783 = vmatmul.mubr.bf16.gmra.mrb[0].mxu0 %v707
        %v784 = vpop.f32.mrb[0].mxu0
        %v785 = vadd.f32 %v612, %v784
        %v786 = vpop.f32.mrb[0].mxu0
        %v787 = vpop.f32.mrb[0].mxu0
        %v788 = vadd.f32 %v615, %v787
        %v789 = vpop.f32.mrb[0].mxu0
        %790 = vmatprep.mubr.bf16.mxu0 0
        %791 = vmatmul.mubr.bf16.gmra.mrb[0].mxu0 %v710
        %v792 = vpop.f32.mrb[0].mxu0
        %v793 = vadd.f32 %v620, %v792
        %v794 = vpop.f32.mrb[0].mxu0
        %v795 = vpop.f32.mrb[0].mxu0
        %v796 = vadd.f32 %v623, %v795
        %v797 = vpop.f32.mrb[0].mxu0
        %798 = vmatprep.mubr.bf16.mxu0 0
        %799 = vmatmul.mubr.bf16.gmra.mrb[0].mxu0 %v713
        %v800 = vpop.f32.mrb[0].mxu0
        %v801 = vadd.f32 %v628, %v800
        %v802 = vpop.f32.mrb[0].mxu0
        %v803 = vpop.f32.mrb[0].mxu0
        %v804 = vadd.f32 %v631, %v803
        %v805 = vpop.f32.mrb[0].mxu0
        %806 = vmatprep.mubr.bf16.mxu0 0
        %807 = vmatmul.mubr.bf16.gmra.mrb[0].mxu0 %v716
        %v808 = vpop.f32.mrb[0].mxu0
        %v809 = vadd.f32 %v636, %v808
        %v810 = vpop.f32.mrb[0].mxu0
        %v811 = vpop.f32.mrb[0].mxu0
        %v812 = vadd.f32 %v639, %v811
        %v813 = vpop.f32.mrb[0].mxu0
        %814 = vdwg.mxu0
        %v815 = vld [vmem:[%s253] sm:$0xe]
        %v816 = vld [vmem:[%s253 + $0xc] sm:$0xe]
        %v817 = vld [vmem:[%s253 + $0x18] sm:$0xe]
        %v818 = vld [vmem:[%s253 + $0x24] sm:$0xe]
        %v819 = vld [vmem:[%s253 + $0x30] sm:$0xe]
        %v820 = vld [vmem:[%s253 + $0x3c] sm:$0xe]
        %v821 = vld [vmem:[%s253 + $0x48] sm:$0xe]
        %v822 = vld [vmem:[%s253 + $0x54] sm:$0xe]
        %vm839 = vcmask 1042432
        %vm840 = vcmask 1046532
        %vm841 = vmor %vm839, %vm840
        %v842 = vrot.slane %v815, 5
        %v843 = vrot.slane %v842, 4
        %v844 = vrot.slane %v257, 5
        %v845 = vsel %vm841, %v843, %v844
        %v846 = vrot.slane %v844, 4
        %v847 = vrot.slane %v276, 5
        %v848 = vsel %vm841, %v846, %v847
        %v849 = vrot.slane %v816, 5
        %v850 = vrot.slane %v849, 4
        %v851 = vrot.slane %v259, 5
        %v852 = vsel %vm841, %v850, %v851
        %v853 = vrot.slane %v851, 4
        %v854 = vrot.slane %v277, 5
        %v855 = vsel %vm841, %v853, %v854
        %v856 = vrot.slane %v817, 5
        %v857 = vrot.slane %v856, 4
        %v858 = vrot.slane %v261, 5
        %v859 = vsel %vm841, %v857, %v858
        %v860 = vrot.slane %v858, 4
        %v861 = vrot.slane %v278, 5
        %v862 = vsel %vm841, %v860, %v861
        %v863 = vrot.slane %v818, 5
        %v864 = vrot.slane %v863, 4
        %v865 = vrot.slane %v263, 5
        %v866 = vsel %vm841, %v864, %v865
        %v867 = vrot.slane %v865, 4
        %v868 = vrot.slane %v279, 5
        %v869 = vsel %vm841, %v867, %v868
        %v870 = vrot.slane %v819, 5
        %v871 = vrot.slane %v870, 4
        %v872 = vrot.slane %v265, 5
        %v873 = vsel %vm841, %v871, %v872
        %v874 = vrot.slane %v872, 4
        %v875 = vrot.slane %v280, 5
        %v876 = vsel %vm841, %v874, %v875
        %v877 = vrot.slane %v820, 5
        %v878 = vrot.slane %v877, 4
        %v879 = vrot.slane %v267, 5
        %v880 = vsel %vm841, %v878, %v879
        %v881 = vrot.slane %v879, 4
        %v882 = vrot.slane %v281, 5
        %v883 = vsel %vm841, %v881, %v882
        %v884 = vrot.slane %v821, 5
        %v885 = vrot.slane %v884, 4
        %v886 = vrot.slane %v269, 5
        %v887 = vsel %vm841, %v885, %v886
        %v888 = vrot.slane %v886, 4
        %v889 = vrot.slane %v282, 5
        %v890 = vsel %vm841, %v888, %v889
        %v891 = vrot.slane %v822, 5
        %v892 = vrot.slane %v891, 4
        %v893 = vrot.slane %v271, 5
        %v894 = vsel %vm841, %v892, %v893
        %v895 = vrot.slane %v893, 4
        %v896 = vrot.slane %v283, 5
        %v897 = vsel %vm841, %v895, %v896
        %s898 = scalar_lea.vmem %s1, 32
        %v899 = vld [vmem:[%s898] sm:$0xf]
        %v900 = vld [vmem:[%s898 + $0x4] sm:$0xf]
        %v901 = vld [vmem:[%s898 + $0x8] sm:$0xf]
        %v902 = vld [vmem:[%s898 + $0xc] sm:$0xf]
        %v903 = vunpack.c.l.b16 %v845
        %v904 = vunpack.c.l.b16 %v848
        %v905 = vunpack.c.l.b16 %v852
        %v906 = vunpack.c.l.b16 %v855
        %v907 = vunpack.c.l.b16 %v859
        %v908 = vunpack.c.l.b16 %v862
        %v909 = vunpack.c.l.b16 %v866
        %v910 = vunpack.c.l.b16 %v869
        %v911 = vunpack.c.l.b16 %v873
        %v912 = vunpack.c.l.b16 %v876
        %v913 = vunpack.c.l.b16 %v880
        %v914 = vunpack.c.l.b16 %v883
        %v915 = vunpack.c.l.b16 %v887
        %v916 = vunpack.c.l.b16 %v890
        %v917 = vunpack.c.l.b16 %v894
        %v918 = vunpack.c.l.b16 %v897
        %v919 = vpack.c.b16 %v904, %v903
        %v920 = vpack.c.b16 %v906, %v905
        %v921 = vpack.c.b16 %v908, %v907
        %v922 = vpack.c.b16 %v910, %v909
        %v923 = vpack.c.b16 %v912, %v911
        %v924 = vpack.c.b16 %v914, %v913
        %v925 = vpack.c.b16 %v916, %v915
        %v926 = vpack.c.b16 %v918, %v917
        %v931 = vunpack.c.l.b16 %v899
        %v932 = vunpack.c.l.b16 %v900
        %v933 = vunpack.c.l.b16 %v901
        %v934 = vunpack.c.l.b16 %v902
        %v935 = vpack.c.b16 %v932, %v931
        %v936 = vpack.c.b16 %v934, %v933
        %v940 = vsel %vm520, %v919, 0
        %v943 = vsel %vm520, %v920, 0
        %v946 = vsel %vm520, %v921, 0
        %v949 = vsel %vm520, %v922, 0
        %v952 = vsel %vm520, %v923, 0
        %v955 = vsel %vm520, %v924, 0
        %v958 = vsel %vm520, %v925, 0
        %v961 = vsel %vm520, %v926, 0
        %963 = vmatprep.subr.bf16.mxu0 0
        %964 = vmatpush1.bf16.msra.mxu0 %v935
        %965 = vmatprep.subr.bf16.mxu0 0
        %966 = vmatpush1.bf16.msra.mxu0 %v936
        %967 = vmatprep.subr.bf16.mxu0 0
        %968 = vmatpush1.bf16.msra.mxu0 0
        %969 = vmatprep.subr.bf16.mxu0 0
        %970 = vmatpush1.bf16.msra.mxu0 0
        %971 = vmatprep.subr.bf16.mxu0 0
        %972 = vmatpush1.bf16.msra.mxu0 0
        %973 = vmatprep.subr.bf16.mxu0 0
        %974 = vmatpush1.bf16.msra.mxu0 0
        %975 = vmatprep.subr.bf16.mxu0 0
        %976 = vmatpush1.bf16.msra.mxu0 0
        %977 = vmatprep.subr.bf16.mxu0 0
        %978 = vmatpush1.bf16.msra.mxu0 0
        %979 = vmatprep.subr.bf16.mxu0 0
        %980 = vmatpush1.bf16.msra.mxu0 0
        %981 = vmatprep.subr.bf16.mxu0 0
        %982 = vmatpush1.bf16.msra.mxu0 0
        %983 = vmatprep.subr.bf16.mxu0 0
        %984 = vmatpush1.bf16.msra.mxu0 0
        %985 = vmatprep.subr.bf16.mxu0 0
        %986 = vmatpush1.bf16.msra.mxu0 0
        %987 = vmatprep.subr.bf16.mxu0 0
        %988 = vmatpush1.bf16.msra.mxu0 0
        %989 = vmatprep.subr.bf16.mxu0 0
        %990 = vmatpush1.bf16.msra.mxu0 0
        %991 = vmatprep.subr.bf16.mxu0 0
        %992 = vmatpush1.bf16.msra.mxu0 0
        %993 = vmatprep.subr.bf16.mxu0 0
        %994 = vmatpush1.bf16.msra.mxu0 0
        %995 = vmatprep.mubr.bf16.mxu0 0
        %996 = vmatmul.mubr.bf16.gmra.mrb[0].mxu0 %v940
        %v997 = vpop.f32.mrb[0].mxu0
        %v998 = vadd.f32 0.0, %v997
        %v999 = vpop.f32.mrb[0].mxu0
        %v1000 = vpop.f32.mrb[0].mxu0
        %v1001 = vadd.f32 0.0, %v1000
        %v1002 = vpop.f32.mrb[0].mxu0
        %1003 = vmatprep.mubr.bf16.mxu0 0
        %1004 = vmatmul.mubr.bf16.gmra.mrb[0].mxu0 %v943
        %v1005 = vpop.f32.mrb[0].mxu0
        %v1006 = vadd.f32 0.0, %v1005
        %v1007 = vpop.f32.mrb[0].mxu0
        %v1008 = vpop.f32.mrb[0].mxu0
        %v1009 = vadd.f32 0.0, %v1008
        %v1010 = vpop.f32.mrb[0].mxu0
        %1011 = vmatprep.mubr.bf16.mxu0 0
        %1012 = vmatmul.mubr.bf16.gmra.mrb[0].mxu0 %v946
        %v1013 = vpop.f32.mrb[0].mxu0
        %v1014 = vadd.f32 0.0, %v1013
        %v1015 = vpop.f32.mrb[0].mxu0
        %v1016 = vpop.f32.mrb[0].mxu0
        %v1017 = vadd.f32 0.0, %v1016
        %v1018 = vpop.f32.mrb[0].mxu0
        %1019 = vmatprep.mubr.bf16.mxu0 0
        %1020 = vmatmul.mubr.bf16.gmra.mrb[0].mxu0 %v949
        %v1021 = vpop.f32.mrb[0].mxu0
        %v1022 = vadd.f32 0.0, %v1021
        %v1023 = vpop.f32.mrb[0].mxu0
        %v1024 = vpop.f32.mrb[0].mxu0
        %v1025 = vadd.f32 0.0, %v1024
        %v1026 = vpop.f32.mrb[0].mxu0
        %1027 = vmatprep.mubr.bf16.mxu0 0
        %1028 = vmatmul.mubr.bf16.gmra.mrb[0].mxu0 %v952
        %v1029 = vpop.f32.mrb[0].mxu0
        %v1030 = vadd.f32 0.0, %v1029
        %v1031 = vpop.f32.mrb[0].mxu0
        %v1032 = vpop.f32.mrb[0].mxu0
        %v1033 = vadd.f32 0.0, %v1032
        %v1034 = vpop.f32.mrb[0].mxu0
        %1035 = vmatprep.mubr.bf16.mxu0 0
        %1036 = vmatmul.mubr.bf16.gmra.mrb[0].mxu0 %v955
        %v1037 = vpop.f32.mrb[0].mxu0
        %v1038 = vadd.f32 0.0, %v1037
        %v1039 = vpop.f32.mrb[0].mxu0
        %v1040 = vpop.f32.mrb[0].mxu0
        %v1041 = vadd.f32 0.0, %v1040
        %v1042 = vpop.f32.mrb[0].mxu0
        %1043 = vmatprep.mubr.bf16.mxu0 0
        %1044 = vmatmul.mubr.bf16.gmra.mrb[0].mxu0 %v958
        %v1045 = vpop.f32.mrb[0].mxu0
        %v1046 = vadd.f32 0.0, %v1045
        %v1047 = vpop.f32.mrb[0].mxu0
        %v1048 = vpop.f32.mrb[0].mxu0
        %v1049 = vadd.f32 0.0, %v1048
        %v1050 = vpop.f32.mrb[0].mxu0
        %1051 = vmatprep.mubr.bf16.mxu0 0
        %1052 = vmatmul.mubr.bf16.gmra.mrb[0].mxu0 %v961
        %v1053 = vpop.f32.mrb[0].mxu0
        %v1054 = vadd.f32 0.0, %v1053
        %v1055 = vpop.f32.mrb[0].mxu0
        %v1056 = vpop.f32.mrb[0].mxu0
        %v1057 = vadd.f32 0.0, %v1056
        %v1058 = vpop.f32.mrb[0].mxu0
        %1059 = vdwg.mxu0
        %v1060 = vadd.f32 %v753, %v998
        %v1061 = vadd.f32 %v756, %v1001
        %v1062 = vadd.f32 %v761, %v1006
        %v1063 = vadd.f32 %v764, %v1009
        %v1064 = vadd.f32 %v769, %v1014
        %v1065 = vadd.f32 %v772, %v1017
        %v1066 = vadd.f32 %v777, %v1022
        %v1067 = vadd.f32 %v780, %v1025
        %v1068 = vadd.f32 %v785, %v1030
        %v1069 = vadd.f32 %v788, %v1033
        %v1070 = vadd.f32 %v793, %v1038
        %v1071 = vadd.f32 %v796, %v1041
        %v1072 = vadd.f32 %v801, %v1046
        %v1073 = vadd.f32 %v804, %v1049
        %v1074 = vadd.f32 %v809, %v1054
        %v1075 = vadd.f32 %v812, %v1057
        %v1076 = vld [vmem:[%s2] sm:$0x1]
        %v1078 = vlaneseq
        %v1079 = vshrl.u32 %v1078, 7
        %v1080 = vsub.s32 0, %v1079
        %v1081 = vrot.slane %v1076, %v1080
        %v1083 = vadd.f32 %v1060, %v1081
        %v1084 = vadd.f32 %v1061, %v1081
        %v1085 = vadd.f32 %v1062, %v1081
        %v1086 = vadd.f32 %v1063, %v1081
        %v1087 = vadd.f32 %v1064, %v1081
        %v1088 = vadd.f32 %v1065, %v1081
        %v1089 = vadd.f32 %v1066, %v1081
        %v1090 = vadd.f32 %v1067, %v1081
        %v1091 = vadd.f32 %v1068, %v1081
        %v1092 = vadd.f32 %v1069, %v1081
        %v1093 = vadd.f32 %v1070, %v1081
        %v1094 = vadd.f32 %v1071, %v1081
        %v1095 = vadd.f32 %v1072, %v1081
        %v1096 = vadd.f32 %v1073, %v1081
        %v1097 = vadd.f32 %v1074, %v1081
        %v1098 = vadd.f32 %v1075, %v1081
        %v1099 = vmax.f32 %v1083, 0.0
        %v1100 = vmax.f32 %v1084, 0.0
        %v1101 = vmax.f32 %v1085, 0.0
        %v1102 = vmax.f32 %v1086, 0.0
        %v1103 = vmax.f32 %v1087, 0.0
        %v1104 = vmax.f32 %v1088, 0.0
        %v1105 = vmax.f32 %v1089, 0.0
        %v1106 = vmax.f32 %v1090, 0.0
        %v1107 = vmax.f32 %v1091, 0.0
        %v1108 = vmax.f32 %v1092, 0.0
        %v1109 = vmax.f32 %v1093, 0.0
        %v1110 = vmax.f32 %v1094, 0.0
        %v1111 = vmax.f32 %v1095, 0.0
        %v1112 = vmax.f32 %v1096, 0.0
        %v1113 = vmax.f32 %v1097, 0.0
        %v1114 = vmax.f32 %v1098, 0.0
        %v1115 = vpack.c.bf16 %v1100, %v1099
        %v1116 = vpack.c.bf16 %v1102, %v1101
        %v1117 = vpack.c.bf16 %v1104, %v1103
        %v1118 = vpack.c.bf16 %v1106, %v1105
        %v1119 = vpack.c.bf16 %v1108, %v1107
        %v1120 = vpack.c.bf16 %v1110, %v1109
        %v1121 = vpack.c.bf16 %v1112, %v1111
        %v1122 = vpack.c.bf16 %v1114, %v1113
        %v1123 = vld [vmem:[%s3] sm:$0xf]
        %v1124 = vld [vmem:[%s3 + $0x4] sm:$0xf]
        %v1125 = vld [vmem:[%s3 + $0x8] sm:$0xf]
        %v1126 = vld [vmem:[%s3 + $0xc] sm:$0xf]
        %v1127 = vld [vmem:[%s3 + $0x10] sm:$0xf]
        %v1128 = vld [vmem:[%s3 + $0x14] sm:$0xf]
        %v1129 = vld [vmem:[%s3 + $0x18] sm:$0xf]
        %v1130 = vld [vmem:[%s3 + $0x1c] sm:$0xf]
        %v1131 = vld [vmem:[%s3 + $0x20] sm:$0xf]
        %v1132 = vld [vmem:[%s3 + $0x24] sm:$0xf]
        %v1133 = vld [vmem:[%s3 + $0x28] sm:$0xf]
        %v1134 = vld [vmem:[%s3 + $0x2c] sm:$0xf]
        %v1135 = vld [vmem:[%s3 + $0x30] sm:$0xf]
        %v1136 = vld [vmem:[%s3 + $0x34] sm:$0xf]
        %v1137 = vld [vmem:[%s3 + $0x38] sm:$0xf]
        %v1138 = vld [vmem:[%s3 + $0x3c] sm:$0xf]
        %v1139 = vld [vmem:[%s4] sm:$0x1]
        %v1141 = vlaneseq
        %v1142 = vshrl.u32 %v1141, 7
        %v1143 = vsub.s32 0, %v1142
        %v1144 = vrot.slane %v1139, %v1143
        %v1162 = vunpack.c.l.b16 %v1123
        %v1163 = vunpack.c.l.b16 %v1124
        %v1164 = vunpack.c.l.b16 %v1125
        %v1165 = vunpack.c.l.b16 %v1126
        %v1166 = vunpack.c.l.b16 %v1127
        %v1167 = vunpack.c.l.b16 %v1128
        %v1168 = vunpack.c.l.b16 %v1129
        %v1169 = vunpack.c.l.b16 %v1130
        %v1170 = vunpack.c.l.b16 %v1131
        %v1171 = vunpack.c.l.b16 %v1132
        %v1172 = vunpack.c.l.b16 %v1133
        %v1173 = vunpack.c.l.b16 %v1134
        %v1174 = vunpack.c.l.b16 %v1135
        %v1175 = vunpack.c.l.b16 %v1136
        %v1176 = vunpack.c.l.b16 %v1137
        %v1177 = vunpack.c.l.b16 %v1138
        %v1178 = vpack.c.b16 %v1163, %v1162
        %v1179 = vpack.c.b16 %v1165, %v1164
        %v1180 = vpack.c.b16 %v1167, %v1166
        %v1181 = vpack.c.b16 %v1169, %v1168
        %v1182 = vpack.c.b16 %v1171, %v1170
        %v1183 = vpack.c.b16 %v1173, %v1172
        %v1184 = vpack.c.b16 %v1175, %v1174
        %v1185 = vpack.c.b16 %v1177, %v1176
        %1194 = vmatprep.subr.bf16.mxu0 0
        %1195 = vmatpush1.bf16.msra.mxu0 %v1178
        %1196 = vmatprep.subr.bf16.mxu0 0
        %1197 = vmatpush1.bf16.msra.mxu0 %v1179
        %1198 = vmatprep.subr.bf16.mxu0 0
        %1199 = vmatpush1.bf16.msra.mxu0 %v1180
        %1200 = vmatprep.subr.bf16.mxu0 0
        %1201 = vmatpush1.bf16.msra.mxu0 %v1181
        %1202 = vmatprep.subr.bf16.mxu0 0
        %1203 = vmatpush1.bf16.msra.mxu0 %v1182
        %1204 = vmatprep.subr.bf16.mxu0 0
        %1205 = vmatpush1.bf16.msra.mxu0 %v1183
        %1206 = vmatprep.subr.bf16.mxu0 0
        %1207 = vmatpush1.bf16.msra.mxu0 %v1184
        %1208 = vmatprep.subr.bf16.mxu0 0
        %1209 = vmatpush1.bf16.msra.mxu0 %v1185
        %1210 = vmatprep.subr.bf16.mxu0 0
        %1211 = vmatpush1.bf16.msra.mxu0 0
        %1212 = vmatprep.subr.bf16.mxu0 0
        %1213 = vmatpush1.bf16.msra.mxu0 0
        %1214 = vmatprep.subr.bf16.mxu0 0
        %1215 = vmatpush1.bf16.msra.mxu0 0
        %1216 = vmatprep.subr.bf16.mxu0 0
        %1217 = vmatpush1.bf16.msra.mxu0 0
        %1218 = vmatprep.subr.bf16.mxu0 0
        %1219 = vmatpush1.bf16.msra.mxu0 0
        %1220 = vmatprep.subr.bf16.mxu0 0
        %1221 = vmatpush1.bf16.msra.mxu0 0
        %1222 = vmatprep.subr.bf16.mxu0 0
        %1223 = vmatpush1.bf16.msra.mxu0 0
        %1224 = vmatprep.subr.bf16.mxu0 0
        %1225 = vmatpush1.bf16.msra.mxu0 0
        %1226 = vmatprep.mubr.bf16.mxu0 0
        %1227 = vmatmul.mubr.bf16.gmra.mrb[0].mxu0 %v1115
        %v1228 = vpop.f32.mrb[0].mxu0
        %v1229 = vadd.f32 %v1144, %v1228
        %v1230 = vpop.f32.mrb[0].mxu0
        %v1231 = vpop.f32.mrb[0].mxu0
        %v1232 = vadd.f32 %v1144, %v1231
        %v1233 = vpop.f32.mrb[0].mxu0
        %1234 = vmatprep.mubr.bf16.mxu0 0
        %1235 = vmatmul.mubr.bf16.gmra.mrb[0].mxu0 %v1116
        %v1236 = vpop.f32.mrb[0].mxu0
        %v1237 = vadd.f32 %v1144, %v1236
        %v1238 = vpop.f32.mrb[0].mxu0
        %v1239 = vpop.f32.mrb[0].mxu0
        %v1240 = vadd.f32 %v1144, %v1239
        %v1241 = vpop.f32.mrb[0].mxu0
        %1242 = vmatprep.mubr.bf16.mxu0 0
        %1243 = vmatmul.mubr.bf16.gmra.mrb[0].mxu0 %v1117
        %v1244 = vpop.f32.mrb[0].mxu0
        %v1245 = vadd.f32 %v1144, %v1244
        %v1246 = vpop.f32.mrb[0].mxu0
        %v1247 = vpop.f32.mrb[0].mxu0
        %v1248 = vadd.f32 %v1144, %v1247
        %v1249 = vpop.f32.mrb[0].mxu0
        %1250 = vmatprep.mubr.bf16.mxu0 0
        %1251 = vmatmul.mubr.bf16.gmra.mrb[0].mxu0 %v1118
        %v1252 = vpop.f32.mrb[0].mxu0
        %v1253 = vadd.f32 %v1144, %v1252
        %v1254 = vpop.f32.mrb[0].mxu0
        %v1255 = vpop.f32.mrb[0].mxu0
        %v1256 = vadd.f32 %v1144, %v1255
        %v1257 = vpop.f32.mrb[0].mxu0
        %1258 = vmatprep.mubr.bf16.mxu0 0
        %1259 = vmatmul.mubr.bf16.gmra.mrb[0].mxu0 %v1119
        %v1260 = vpop.f32.mrb[0].mxu0
        %v1261 = vadd.f32 %v1144, %v1260
        %v1262 = vpop.f32.mrb[0].mxu0
        %v1263 = vpop.f32.mrb[0].mxu0
        %v1264 = vadd.f32 %v1144, %v1263
        %v1265 = vpop.f32.mrb[0].mxu0
        %1266 = vmatprep.mubr.bf16.mxu0 0
        %1267 = vmatmul.mubr.bf16.gmra.mrb[0].mxu0 %v1120
        %v1268 = vpop.f32.mrb[0].mxu0
        %v1269 = vadd.f32 %v1144, %v1268
        %v1270 = vpop.f32.mrb[0].mxu0
        %v1271 = vpop.f32.mrb[0].mxu0
        %v1272 = vadd.f32 %v1144, %v1271
        %v1273 = vpop.f32.mrb[0].mxu0
        %1274 = vmatprep.mubr.bf16.mxu0 0
        %1275 = vmatmul.mubr.bf16.gmra.mrb[0].mxu0 %v1121
        %v1276 = vpop.f32.mrb[0].mxu0
        %v1277 = vadd.f32 %v1144, %v1276
        %v1278 = vpop.f32.mrb[0].mxu0
        %v1279 = vpop.f32.mrb[0].mxu0
        %v1280 = vadd.f32 %v1144, %v1279
        %v1281 = vpop.f32.mrb[0].mxu0
        %1282 = vmatprep.mubr.bf16.mxu0 0
        %1283 = vmatmul.mubr.bf16.gmra.mrb[0].mxu0 %v1122
        %v1284 = vpop.f32.mrb[0].mxu0
        %v1285 = vadd.f32 %v1144, %v1284
        %v1286 = vpop.f32.mrb[0].mxu0
        %v1287 = vpop.f32.mrb[0].mxu0
        %v1288 = vadd.f32 %v1144, %v1287
        %v1289 = vpop.f32.mrb[0].mxu0
        %1290 = vdwg.mxu0
        %v1291 = vtanh.pop %v1229
        %v1292 = vtanh.pop %v1232
        %v1293 = vtanh.pop %v1237
        %v1294 = vtanh.pop %v1240
        %v1295 = vtanh.pop %v1245
        %v1296 = vtanh.pop %v1248
        %v1297 = vtanh.pop %v1253
        %v1298 = vtanh.pop %v1256
        %v1299 = vtanh.pop %v1261
        %v1300 = vtanh.pop %v1264
        %v1301 = vtanh.pop %v1269
        %v1302 = vtanh.pop %v1272
        %v1303 = vtanh.pop %v1277
        %v1304 = vtanh.pop %v1280
        %v1305 = vtanh.pop %v1285
        %v1306 = vtanh.pop %v1288
        %v1307 = vld [vmem:[%s5] sm:$0x1]
        %v1309 = vlaneseq
        %v1310 = vshrl.u32 %v1309, 7
        %v1311 = vsub.s32 0, %v1310
        %v1312 = vrot.slane %v1307, %v1311
        %v1314 = vmul.f32 %v1291, %v1312
        %v1315 = vmul.f32 %v1292, %v1312
        %v1316 = vmul.f32 %v1293, %v1312
        %v1317 = vmul.f32 %v1294, %v1312
        %v1318 = vmul.f32 %v1295, %v1312
        %v1319 = vmul.f32 %v1296, %v1312
        %v1320 = vmul.f32 %v1297, %v1312
        %v1321 = vmul.f32 %v1298, %v1312
        %v1322 = vmul.f32 %v1299, %v1312
        %v1323 = vmul.f32 %v1300, %v1312
        %v1324 = vmul.f32 %v1301, %v1312
        %v1325 = vmul.f32 %v1302, %v1312
        %v1326 = vmul.f32 %v1303, %v1312
        %v1327 = vmul.f32 %v1304, %v1312
        %v1328 = vmul.f32 %v1305, %v1312
        %v1329 = vmul.f32 %v1306, %v1312
        %1330 = vadd.xlane.f32.xlu0 %v1314
        %v1331 = vpop.xlane.xlu0 %1330
        %1332 = vadd.xlane.f32.xlu0 %v1315
        %v1333 = vpop.xlane.xlu0 %1332
        %1334 = vadd.xlane.f32.xlu0 %v1316
        %v1335 = vpop.xlane.xlu0 %1334
        %1336 = vadd.xlane.f32.xlu0 %v1317
        %v1337 = vpop.xlane.xlu0 %1336
        %1338 = vadd.xlane.f32.xlu0 %v1318
        %v1339 = vpop.xlane.xlu0 %1338
        %1340 = vadd.xlane.f32.xlu0 %v1319
        %v1341 = vpop.xlane.xlu0 %1340
        %1342 = vadd.xlane.f32.xlu0 %v1320
        %v1343 = vpop.xlane.xlu0 %1342
        %1344 = vadd.xlane.f32.xlu0 %v1321
        %v1345 = vpop.xlane.xlu0 %1344
        %1346 = vadd.xlane.f32.xlu0 %v1322
        %v1347 = vpop.xlane.xlu0 %1346
        %1348 = vadd.xlane.f32.xlu0 %v1323
        %v1349 = vpop.xlane.xlu0 %1348
        %1350 = vadd.xlane.f32.xlu0 %v1324
        %v1351 = vpop.xlane.xlu0 %1350
        %1352 = vadd.xlane.f32.xlu0 %v1325
        %v1353 = vpop.xlane.xlu0 %1352
        %1354 = vadd.xlane.f32.xlu0 %v1326
        %v1355 = vpop.xlane.xlu0 %1354
        %1356 = vadd.xlane.f32.xlu0 %v1327
        %v1357 = vpop.xlane.xlu0 %1356
        %1358 = vadd.xlane.f32.xlu0 %v1328
        %v1359 = vpop.xlane.xlu0 %1358
        %1360 = vadd.xlane.f32.xlu0 %v1329
        %v1361 = vpop.xlane.xlu0 %1360
        %v1362 = vmax.f32 %v1331, %v1333
        %v1363 = vrot.slane %v1362, 4
        %v1364 = vmax.f32 %v1362, %v1363
        %v1365 = vrot.slane %v1364, 2
        %v1366 = vmax.f32 %v1364, %v1365
        %v1367 = vrot.slane %v1366, 1
        %v1368 = vmax.f32 %v1366, %v1367
        %v1369 = vmax.f32 %v1335, %v1337
        %v1370 = vrot.slane %v1369, 4
        %v1371 = vmax.f32 %v1369, %v1370
        %v1372 = vrot.slane %v1371, 2
        %v1373 = vmax.f32 %v1371, %v1372
        %v1374 = vrot.slane %v1373, 1
        %v1375 = vmax.f32 %v1373, %v1374
        %v1376 = vmax.f32 %v1339, %v1341
        %v1377 = vrot.slane %v1376, 4
        %v1378 = vmax.f32 %v1376, %v1377
        %v1379 = vrot.slane %v1378, 2
        %v1380 = vmax.f32 %v1378, %v1379
        %v1381 = vrot.slane %v1380, 1
        %v1382 = vmax.f32 %v1380, %v1381
        %v1383 = vmax.f32 %v1343, %v1345
        %v1384 = vrot.slane %v1383, 4
        %v1385 = vmax.f32 %v1383, %v1384
        %v1386 = vrot.slane %v1385, 2
        %v1387 = vmax.f32 %v1385, %v1386
        %v1388 = vrot.slane %v1387, 1
        %v1389 = vmax.f32 %v1387, %v1388
        %v1390 = vmax.f32 %v1347, %v1349
        %v1391 = vrot.slane %v1390, 4
        %v1392 = vmax.f32 %v1390, %v1391
        %v1393 = vrot.slane %v1392, 2
        %v1394 = vmax.f32 %v1392, %v1393
        %v1395 = vrot.slane %v1394, 1
        %v1396 = vmax.f32 %v1394, %v1395
        %v1397 = vmax.f32 %v1351, %v1353
        %v1398 = vrot.slane %v1397, 4
        %v1399 = vmax.f32 %v1397, %v1398
        %v1400 = vrot.slane %v1399, 2
        %v1401 = vmax.f32 %v1399, %v1400
        %v1402 = vrot.slane %v1401, 1
        %v1403 = vmax.f32 %v1401, %v1402
        %v1404 = vmax.f32 %v1355, %v1357
        %v1405 = vrot.slane %v1404, 4
        %v1406 = vmax.f32 %v1404, %v1405
        %v1407 = vrot.slane %v1406, 2
        %v1408 = vmax.f32 %v1406, %v1407
        %v1409 = vrot.slane %v1408, 1
        %v1410 = vmax.f32 %v1408, %v1409
        %v1411 = vmax.f32 %v1359, %v1361
        %v1412 = vrot.slane %v1411, 4
        %v1413 = vmax.f32 %v1411, %v1412
        %v1414 = vrot.slane %v1413, 2
        %v1415 = vmax.f32 %v1413, %v1414
        %v1416 = vrot.slane %v1415, 1
        %v1417 = vmax.f32 %v1415, %v1416
        %v1418 = vsub.f32 %v1331, %v1368
        %v1419 = vsub.f32 %v1333, %v1368
        %v1420 = vsub.f32 %v1335, %v1375
        %v1421 = vsub.f32 %v1337, %v1375
        %v1422 = vsub.f32 %v1339, %v1382
        %v1423 = vsub.f32 %v1341, %v1382
        %v1424 = vsub.f32 %v1343, %v1389
        %v1425 = vsub.f32 %v1345, %v1389
        %v1426 = vsub.f32 %v1347, %v1396
        %v1427 = vsub.f32 %v1349, %v1396
        %v1428 = vsub.f32 %v1351, %v1403
        %v1429 = vsub.f32 %v1353, %v1403
        %v1430 = vsub.f32 %v1355, %v1410
        %v1431 = vsub.f32 %v1357, %v1410
        %v1432 = vsub.f32 %v1359, %v1417
        %v1433 = vsub.f32 %v1361, %v1417
        %v1434 = vmul.f32 %v1418, 1.442695
        %v1435 = vpow.pop %v1434
        %v1436 = vmul.f32 %v1419, 1.442695
        %v1437 = vpow.pop %v1436
        %v1438 = vmul.f32 %v1420, 1.442695
        %v1439 = vpow.pop %v1438
        %v1440 = vmul.f32 %v1421, 1.442695
        %v1441 = vpow.pop %v1440
        %v1442 = vmul.f32 %v1422, 1.442695
        %v1443 = vpow.pop %v1442
        %v1444 = vmul.f32 %v1423, 1.442695
        %v1445 = vpow.pop %v1444
        %v1446 = vmul.f32 %v1424, 1.442695
        %v1447 = vpow.pop %v1446
        %v1448 = vmul.f32 %v1425, 1.442695
        %v1449 = vpow.pop %v1448
        %v1450 = vmul.f32 %v1426, 1.442695
        %v1451 = vpow.pop %v1450
        %v1452 = vmul.f32 %v1427, 1.442695
        %v1453 = vpow.pop %v1452
        %v1454 = vmul.f32 %v1428, 1.442695
        %v1455 = vpow.pop %v1454
        %v1456 = vmul.f32 %v1429, 1.442695
        %v1457 = vpow.pop %v1456
        %v1458 = vmul.f32 %v1430, 1.442695
        %v1459 = vpow.pop %v1458
        %v1460 = vmul.f32 %v1431, 1.442695
        %v1461 = vpow.pop %v1460
        %v1462 = vmul.f32 %v1432, 1.442695
        %v1463 = vpow.pop %v1462
        %v1464 = vmul.f32 %v1433, 1.442695
        %v1465 = vpow.pop %v1464
        %v1466 = vadd.f32 %v1435, %v1437
        %v1467 = vrot.slane %v1466, 4
        %v1468 = vadd.f32 %v1466, %v1467
        %v1469 = vrot.slane %v1468, 2
        %v1470 = vadd.f32 %v1468, %v1469
        %v1471 = vrot.slane %v1470, 1
        %v1472 = vadd.f32 %v1470, %v1471
        %v1473 = vadd.f32 %v1439, %v1441
        %v1474 = vrot.slane %v1473, 4
        %v1475 = vadd.f32 %v1473, %v1474
        %v1476 = vrot.slane %v1475, 2
        %v1477 = vadd.f32 %v1475, %v1476
        %v1478 = vrot.slane %v1477, 1
        %v1479 = vadd.f32 %v1477, %v1478
        %v1480 = vadd.f32 %v1443, %v1445
        %v1481 = vrot.slane %v1480, 4
        %v1482 = vadd.f32 %v1480, %v1481
        %v1483 = vrot.slane %v1482, 2
        %v1484 = vadd.f32 %v1482, %v1483
        %v1485 = vrot.slane %v1484, 1
        %v1486 = vadd.f32 %v1484, %v1485
        %v1487 = vadd.f32 %v1447, %v1449
        %v1488 = vrot.slane %v1487, 4
        %v1489 = vadd.f32 %v1487, %v1488
        %v1490 = vrot.slane %v1489, 2
        %v1491 = vadd.f32 %v1489, %v1490
        %v1492 = vrot.slane %v1491, 1
        %v1493 = vadd.f32 %v1491, %v1492
        %v1494 = vadd.f32 %v1451, %v1453
        %v1495 = vrot.slane %v1494, 4
        %v1496 = vadd.f32 %v1494, %v1495
        %v1497 = vrot.slane %v1496, 2
        %v1498 = vadd.f32 %v1496, %v1497
        %v1499 = vrot.slane %v1498, 1
        %v1500 = vadd.f32 %v1498, %v1499
        %v1501 = vadd.f32 %v1455, %v1457
        %v1502 = vrot.slane %v1501, 4
        %v1503 = vadd.f32 %v1501, %v1502
        %v1504 = vrot.slane %v1503, 2
        %v1505 = vadd.f32 %v1503, %v1504
        %v1506 = vrot.slane %v1505, 1
        %v1507 = vadd.f32 %v1505, %v1506
        %v1508 = vadd.f32 %v1459, %v1461
        %v1509 = vrot.slane %v1508, 4
        %v1510 = vadd.f32 %v1508, %v1509
        %v1511 = vrot.slane %v1510, 2
        %v1512 = vadd.f32 %v1510, %v1511
        %v1513 = vrot.slane %v1512, 1
        %v1514 = vadd.f32 %v1512, %v1513
        %v1515 = vadd.f32 %v1463, %v1465
        %v1516 = vrot.slane %v1515, 4
        %v1517 = vadd.f32 %v1515, %v1516
        %v1518 = vrot.slane %v1517, 2
        %v1519 = vadd.f32 %v1517, %v1518
        %v1520 = vrot.slane %v1519, 1
        %v1521 = vadd.f32 %v1519, %v1520
        %v1522 = vrcp.pop %v1472
        %v1523 = vmul.f32 %v1435, %v1522
        %v1524 = vmul.f32 %v1437, %v1522
        %v1525 = vrcp.pop %v1479
        %v1526 = vmul.f32 %v1439, %v1525
        %v1527 = vmul.f32 %v1441, %v1525
        %v1528 = vrcp.pop %v1486
        %v1529 = vmul.f32 %v1443, %v1528
        %v1530 = vmul.f32 %v1445, %v1528
        %v1531 = vrcp.pop %v1493
        %v1532 = vmul.f32 %v1447, %v1531
        %v1533 = vmul.f32 %v1449, %v1531
        %v1534 = vrcp.pop %v1500
        %v1535 = vmul.f32 %v1451, %v1534
        %v1536 = vmul.f32 %v1453, %v1534
        %v1537 = vrcp.pop %v1507
        %v1538 = vmul.f32 %v1455, %v1537
        %v1539 = vmul.f32 %v1457, %v1537
        %v1540 = vrcp.pop %v1514
        %v1541 = vmul.f32 %v1459, %v1540
        %v1542 = vmul.f32 %v1461, %v1540
        %v1543 = vrcp.pop %v1521
        %v1544 = vmul.f32 %v1463, %v1543
        %v1545 = vmul.f32 %v1465, %v1543
        %v1546 = vmul.f32 %v1523, %v1099
        %v1547 = vmul.f32 %v1524, %v1100
        %v1548 = vmul.f32 %v1526, %v1101
        %v1549 = vmul.f32 %v1527, %v1102
        %v1550 = vmul.f32 %v1529, %v1103
        %v1551 = vmul.f32 %v1530, %v1104
        %v1552 = vmul.f32 %v1532, %v1105
        %v1553 = vmul.f32 %v1533, %v1106
        %v1554 = vmul.f32 %v1535, %v1107
        %v1555 = vmul.f32 %v1536, %v1108
        %v1556 = vmul.f32 %v1538, %v1109
        %v1557 = vmul.f32 %v1539, %v1110
        %v1558 = vmul.f32 %v1541, %v1111
        %v1559 = vmul.f32 %v1542, %v1112
        %v1560 = vmul.f32 %v1544, %v1113
        %v1561 = vmul.f32 %v1545, %v1114
        %v1562 = vadd.f32 %v1546, %v1547
        %v1563 = vrot.slane %v1562, 4
        %v1564 = vadd.f32 %v1562, %v1563
        %v1565 = vrot.slane %v1564, 2
        %v1566 = vadd.f32 %v1564, %v1565
        %v1567 = vrot.slane %v1566, 1
        %v1568 = vadd.f32 %v1566, %v1567
        %v1569 = vadd.f32 %v1548, %v1549
        %v1570 = vrot.slane %v1569, 4
        %v1571 = vadd.f32 %v1569, %v1570
        %v1572 = vrot.slane %v1571, 2
        %v1573 = vadd.f32 %v1571, %v1572
        %v1574 = vrot.slane %v1573, 1
        %v1575 = vadd.f32 %v1573, %v1574
        %v1576 = vadd.f32 %v1550, %v1551
        %v1577 = vrot.slane %v1576, 4
        %v1578 = vadd.f32 %v1576, %v1577
        %v1579 = vrot.slane %v1578, 2
        %v1580 = vadd.f32 %v1578, %v1579
        %v1581 = vrot.slane %v1580, 1
        %v1582 = vadd.f32 %v1580, %v1581
        %v1583 = vadd.f32 %v1552, %v1553
        %v1584 = vrot.slane %v1583, 4
        %v1585 = vadd.f32 %v1583, %v1584
        %v1586 = vrot.slane %v1585, 2
        %v1587 = vadd.f32 %v1585, %v1586
        %v1588 = vrot.slane %v1587, 1
        %v1589 = vadd.f32 %v1587, %v1588
        %v1590 = vadd.f32 %v1554, %v1555
        %v1591 = vrot.slane %v1590, 4
        %v1592 = vadd.f32 %v1590, %v1591
        %v1593 = vrot.slane %v1592, 2
        %v1594 = vadd.f32 %v1592, %v1593
        %v1595 = vrot.slane %v1594, 1
        %v1596 = vadd.f32 %v1594, %v1595
        %v1597 = vadd.f32 %v1556, %v1557
        %v1598 = vrot.slane %v1597, 4
        %v1599 = vadd.f32 %v1597, %v1598
        %v1600 = vrot.slane %v1599, 2
        %v1601 = vadd.f32 %v1599, %v1600
        %v1602 = vrot.slane %v1601, 1
        %v1603 = vadd.f32 %v1601, %v1602
        %v1604 = vadd.f32 %v1558, %v1559
        %v1605 = vrot.slane %v1604, 4
        %v1606 = vadd.f32 %v1604, %v1605
        %v1607 = vrot.slane %v1606, 2
        %v1608 = vadd.f32 %v1606, %v1607
        %v1609 = vrot.slane %v1608, 1
        %v1610 = vadd.f32 %v1608, %v1609
        %v1611 = vadd.f32 %v1560, %v1561
        %v1612 = vrot.slane %v1611, 4
        %v1613 = vadd.f32 %v1611, %v1612
        %v1614 = vrot.slane %v1613, 2
        %v1615 = vadd.f32 %v1613, %v1614
        %v1616 = vrot.slane %v1615, 1
        %v1617 = vadd.f32 %v1615, %v1616
        %vm1626 = vcmask 1041409
        %v1627 = vsel %vm1626, %v1575, %v1568
        %vm1628 = vcmask 1042434
        %v1629 = vsel %vm1628, %v1582, %v1627
        %vm1630 = vcmask 1043459
        %v1631 = vsel %vm1630, %v1589, %v1629
        %vm1632 = vcmask 1044484
        %v1633 = vsel %vm1632, %v1596, %v1631
        %vm1634 = vcmask 1045509
        %v1635 = vsel %vm1634, %v1603, %v1633
        %vm1636 = vcmask 1046534
        %v1637 = vsel %vm1636, %v1610, %v1635
        %vm1638 = vcmask 1047559
        %v1639 = vsel %vm1638, %v1617, %v1637
        %1641 = vst [vmem:[%s247] sm:$0xff] %v1639
        %s1642 = sand.u32 %s159, 1
        %s1643 = scalar_lea.sflag [#allocation3], %s1642
        %s1644 = sand.u32 %s159, 1
        %s1645 = smul.addr %s1644, 8
        %s1646 = scalar_lea.vmem [#allocation2], %s1645
        // Predicated region
        $region45: #{tpu_custom_call.1} parent=43 // pred_check
          %p1647 = pneg %p169
        $region46: #{tpu_custom_call.1} parent=43 // pred_check_branch
          %1649 = sbr.rel (%p1647) target = $region48
        $region47: #{tpu_custom_call.1} parent=43 // pred_region
          %s1651 = ssub.s32 128, 128
          %1652 = vsyncadd %s1643, %s1651
          %s1653 = smul.addr %s20, 128
          %s1654 = scalar_lea.hbm %s6, %s1653
          %s1656 = sshll.u32 %s1646, 4
          %s1657 = int_to_ptr.vmem [resolvable:$true] %s1656
          %1659 = dma.vmem_to_hbm [thread:$0]  %s1657, 128, %s1654, %s1643
        $region48: #{tpu_custom_call.1} parent=43 // pred_fallthru
          _
      $region44: #{tpu_custom_call.1} parent=5 // pred_fallthru
        _
      %p1660 = scmp.le.s32.totalorder 2, %s15
      // Predicated region
      $region49: #{tpu_custom_call.1} parent=5 // pred_check
        %p1661 = pneg %p1660
      $region50: #{tpu_custom_call.1} parent=5 // pred_check_branch
        %1663 = sbr.rel (%p1661) target = $region52
      $region51: #{tpu_custom_call.1} parent=5 // pred_region
        %s1664 = ssub.s32 %s15, 2
        // Predicated region
        $region53: #{tpu_custom_call.1} parent=51 // pred_check
          %p1665 = pneg %p175
        $region54: #{tpu_custom_call.1} parent=51 // pred_check_branch
          %1667 = sbr.rel (%p1665) target = $region56
        $region55: #{tpu_custom_call.1} parent=51 // pred_region
          %s1668 = sand.u32 %s160, 1
          %s1669 = scalar_lea.sflag [#allocation3], %s1668
          %s1670 = sand.u32 %s160, 1
          %s1671 = smul.addr %s1670, 8
          %s1672 = scalar_lea.vmem [#allocation2], %s1671
          %1673 = dma.done %s1669, 128
        $region56: #{tpu_custom_call.1} parent=51 // pred_fallthru
          _
      $region52: #{tpu_custom_call.1} parent=5 // pred_fallthru
        _
    $region6: #{tpu_custom_call.1} parent=1 // loop_footer
      %s19 = sadd.s32 1, %s15
    $region7: #{tpu_custom_call.1} parent=1 // loop_footer_branch
      %14 = sbr.rel target = $region3
    $region8: #{tpu_custom_call.1} parent=1 // loop_exit
      _
    %1674 = vsyncpa [#allocation3], 1
    %s1675 = scalar_lea.sflag [#allocation3], 1
    %1676 = vsyncpa %s1675, 1

</llo_original>
